<compile_context>
chip_gen: v7x
topology: tpu7x:2x2x1
jax: 0.10.0
libtpu: 0.0.40
codegen_flags: <defaults>
</compile_context>

<pallas_src>
import functools

import numpy as np

import jax
import jax.numpy as jnp
from jax.experimental import pallas as pl
from jax.experimental.pallas import tpu as pltpu

KSIZE = 3


def _round_up(x, m):
    return (x + m - 1) // m * m


def _pick_tile_rows(H, W, halo, target_lanes=1024):
    """Largest TH dividing H with TH*W a multiple of 128, >= halo, and <= target_lanes
    (falls back to the smallest valid TH if none fits the target)."""
    smallest = None
    best = None
    for th in range(1, H + 1):
        if H % th:
            continue
        tile = th * W
        if tile % 128 or tile < halo:
            continue
        if smallest is None:
            smallest = th
        if tile <= target_lanes:
            best = th
    if best is None:
        best = smallest
    if best is None:
        raise ValueError(
            f"No valid spatial tile for H={H}, W={W}: need TH | H with TH*W a multiple "
            f"of 128 and >= {halo} (consider padding H*W).")
    return best


def _compiler_params():
    kwargs = dict(dimension_semantics=("parallel", "parallel"))
    try:
        cap = pltpu.get_tpu_info().vmem_capacity_bytes
        if isinstance(cap, int) and cap > 0:
            # Leave headroom for compiler scratch + double-buffered blocks
            # (important on v7x where physical VMEM is only 64 MiB per core).
            kwargs["vmem_limit_bytes"] = int(cap * 3 // 4)
    except Exception:  # pragma: no cover - fall back to Mosaic's default limit
        pass
    return pltpu.CompilerParams(**kwargs)


def _rdb_conv_kernel(x_hbm, w_ref, b_ref, o_ref, xb, sems, *,
                     W, Cin, G, TILE, HALO, HW, mm_dtype):
    # x_hbm : (N, Cin, H*W) raw HBM ref (pl.ANY)
    # w_ref : (9, G, Cin)   per-tap weights, k = (dh+1)*3 + (dw+1), in mm_dtype
    # b_ref : (G, 1)        bias, f32
    # o_ref : (1, Cin+G, TILE) output block = concat([x, relu(conv)], channels)
    # xb    : (Cin, 2*HALO+TILE) VMEM scratch: [top halo | center tile | bottom halo]
    # sems  : (3,) DMA semaphores
    n = pl.program_id(0)
    t = pl.program_id(1)
    num_t = pl.num_programs(1)
    L = 2 * HALO + TILE

    base = pl.multiple_of(t * TILE, 128)                      # first pixel of this tile
    top_src = pl.multiple_of(jnp.maximum(base - HALO, 0), 128)
    bot_src = pl.multiple_of(jnp.minimum(base + TILE, HW - HALO), 128)

    # --- Manual halo DMA (all windows lane-aligned, >= 128 wide). Sources at the image
    # --- edges are clamped; the bogus data there is overwritten with zeros below.
    cp_top = pltpu.make_async_copy(x_hbm.at[n, :, pl.ds(top_src, HALO)],
                                   xb.at[:, pl.ds(0, HALO)], sems.at[0])
    cp_mid = pltpu.make_async_copy(x_hbm.at[n, :, pl.ds(base, TILE)],
                                   xb.at[:, pl.ds(HALO, TILE)], sems.at[1])
    cp_bot = pltpu.make_async_copy(x_hbm.at[n, :, pl.ds(base + TILE - TILE + bot_src * 0 + bot_src, HALO)]
                                   if False else
                                   x_hbm.at[n, :, pl.ds(bot_src, HALO)],
                                   xb.at[:, pl.ds(HALO + TILE, HALO)], sems.at[2])
    cp_top.start()
    cp_mid.start()
    cp_bot.start()
    cp_top.wait()
    cp_mid.wait()
    cp_bot.wait()

    # Rows above the first / below the last image row contribute zeros ("same" padding).
    @pl.when(t == 0)
    def _():
        xb[:, 0:HALO] = jnp.zeros((Cin, HALO), xb.dtype)

    @pl.when(t == num_t - 1)
    def _():
        xb[:, HALO + TILE:L] = jnp.zeros((Cin, HALO), xb.dtype)

    # --- Column-validity masks, lane-only (1, TILE): cheap VPU preamble.
    lane = jax.lax.broadcasted_iota(jnp.int32, (1, TILE), 1)
    col = lane % W                      # power-of-two W lowers to an AND
    left_ok = col >= 1                  # dw = -1 taps valid
    right_ok = col < (W - 1)            # dw = +1 taps valid

    xf = xb[...]                        # (Cin, L), input dtype

    # --- 9 accumulated K=Cin MXU matmuls (no materialized im2col patch).
    acc = None
    center = None
    k = 0
    for dh in (-1, 0, 1):
        for dw in (-1, 0, 1):
            start = HALO + dh * W + dw                     # static, in [HALO-W-1, HALO+W+1]
            tap = pltpu.roll(xf, (L - start) % L, axis=1)[:, :TILE]   # tap[p] = xf[p+start]
            if dw == -1:
                tap = jnp.where(left_ok, tap, 0)
            elif dw == 1:
                tap = jnp.where(right_ok, tap, 0)
            if dh == 0 and dw == 0:
                center = tap            # exact copy of the x tile; reused for the concat
            part = jnp.dot(w_ref[k], tap.astype(mm_dtype),
                           preferred_element_type=jnp.float32)
            acc = part if acc is None else acc + part
            k += 1

    conv = jnp.maximum(acc + b_ref[...], 0.0)              # bias + ReLU in f32

    # --- Lane-dense concat stores: channels [0, Cin) = x, [Cin, Cin+G) = relu(conv).
    o_ref[0, :Cin, :] = center.astype(o_ref.dtype)
    o_ref[0, Cin:, :] = conv.astype(o_ref.dtype)


def rdb_conv(x_nchw, weight, bias, *, tile_rows=None, matmul_dtype=jnp.bfloat16):
    """x_nchw: (N, Cin, H, W); weight: (G, Cin, 3, 3); bias: (G,).
    Returns (N, Cin + G, H, W) == torch.cat((x, relu(conv2d(x, pad=1))), dim=1)."""
    N, Cin, H, W = x_nchw.shape
    G, Cin_w, kh, kw = weight.shape
    assert (kh, kw) == (KSIZE, KSIZE) and Cin_w == Cin
    HW = H * W

    HALO = _round_up(W + 1, 128)
    if tile_rows is None:
        tile_rows = _pick_tile_rows(H, W, HALO)
    TH = tile_rows
    TILE = TH * W
    if H % TH or TILE % 128 or TILE < HALO:
        raise ValueError(f"invalid tile_rows={TH} for H={H}, W={W} (HALO={HALO})")
    T = H // TH

    # Metadata-only reshape; HW is already contiguous in NCHW.
    x_flat = x_nchw.reshape(N, Cin, HW)

    # (G, Cin, kh, kw) -> (kh, kw, G, Cin) -> (9, G, Cin); row k matches the kernel's
    # (dh outer, dw inner) tap order.  Cast once to the MXU operand dtype (bf16).
    w9 = jnp.transpose(weight, (2, 3, 0, 1)).reshape(KSIZE * KSIZE, G, Cin)
    w9 = w9.astype(matmul_dtype)
    b2 = bias.reshape(G, 1).astype(jnp.float32)

    kernel = functools.partial(_rdb_conv_kernel, W=W, Cin=Cin, G=G, TILE=TILE,
                               HALO=HALO, HW=HW, mm_dtype=matmul_dtype)

    itemsize = jnp.dtype(x_nchw.dtype).itemsize
    bytes_accessed = (x_flat.size * itemsize
                      + N * (Cin + G) * HW * itemsize
                      + w9.size * jnp.dtype(matmul_dtype).itemsize
                      + b2.size * 4)
    cost = pl.CostEstimate(flops=2 * N * G * KSIZE * KSIZE * Cin * HW,
                           transcendentals=0,
                           bytes_accessed=int(bytes_accessed))

    out_flat = pl.pallas_call(
        kernel,
        out_shape=jax.ShapeDtypeStruct((N, Cin + G, HW), x_nchw.dtype),
        grid_spec=pltpu.PrefetchScalarGridSpec(
            num_scalar_prefetch=0,
            grid=(N, T),
            in_specs=[
                pl.BlockSpec(memory_space=pl.ANY),                       # x stays in HBM
                pl.BlockSpec((KSIZE * KSIZE, G, Cin), lambda n, t: (0, 0, 0)),
                pl.BlockSpec((G, 1), lambda n, t: (0, 0)),
            ],
            out_specs=pl.BlockSpec((1, Cin + G, TILE), lambda n, t: (n, 0, t)),
            scratch_shapes=[
                pltpu.VMEM((Cin, 2 * HALO + TILE), x_nchw.dtype),
                pltpu.SemaphoreType.DMA((3,)),
            ],
        ),
        compiler_params=_compiler_params(),
        cost_estimate=cost,
    )(x_flat, w9, b2)

    return out_flat.reshape(N, Cin + G, H, W)


def _reference(x, weight, bias, operand_dtype=None):
    """float64 reference of conv3x3('same') + bias + ReLU, concat with x.  If
    operand_dtype is given, the conv operands are first rounded to it (mirrors the
    kernel's MXU operand cast); accumulation stays in float64."""
    if operand_dtype is not None:
        xc = np.asarray(jnp.asarray(x).astype(operand_dtype).astype(jnp.float32))
        wc = np.asarray(jnp.asarray(weight).astype(operand_dtype).astype(jnp.float32))
    else:
        xc = np.asarray(x)
        wc = np.asarray(weight)
    xc = xc.astype(np.float64)
    wc = wc.astype(np.float64)
    b = np.asarray(bias).astype(np.float64)
    N, Cin, H, W = xc.shape
    G = wc.shape[0]
    xp = np.pad(xc, ((0, 0), (0, 0), (1, 1), (1, 1)))
    out = np.zeros((N, G, H, W), np.float64)
    for kh in range(KSIZE):
        for kw in range(KSIZE):
            out += np.einsum("gc,nchw->nghw", wc[:, :, kh, kw],
                             xp[:, :, kh:kh + H, kw:kw + W])
    out = np.maximum(out + b.reshape(1, -1, 1, 1), 0.0)
    return np.concatenate([np.asarray(x, np.float64), out], axis=1)


if __name__ == "__main__":
    N, Cin, H, W = 2, 4, 16, 16
    G = 8

    key = jax.random.PRNGKey(0)
    kx, kw, kb = jax.random.split(key, 3)
    x = jax.random.normal(kx, (N, Cin, H, W), dtype=jnp.float32)
    bound = 1.0 / (Cin * KSIZE * KSIZE) ** 0.5
    weight = jax.random.uniform(kw, (G, Cin, KSIZE, KSIZE),
                                minval=-bound, maxval=bound, dtype=jnp.float32)
    bias = jax.random.uniform(kb, (G,), minval=-bound, maxval=bound,
                              dtype=jnp.float32)

    ref_bf16 = _reference(x, weight, bias, operand_dtype=jnp.bfloat16)
    ref_full = _reference(x, weight, bias)

    # tile_rows=8 -> two spatial tiles per image (exercises the interior-halo DMA path);
    # tile_rows=None -> auto pick (single 16x16 tile here).
    for tile_rows in (8, None):
        out = rdb_conv(x, weight, bias, tile_rows=tile_rows,
                       matmul_dtype=jnp.bfloat16)
        out = jax.block_until_ready(out)
        assert out.shape == (N, Cin + G, H, W), out.shape
        out_np = np.asarray(out, np.float64)
        # Passthrough channels must be bit-exact copies of x.
        assert np.array_equal(out_np[:, :Cin], np.asarray(x, np.float64)), (
            f"passthrough mismatch (tile_rows={tile_rows})")
        # Tight check vs a reference with the same bf16 operand rounding (only f32
        # accumulation-order noise remains).
        assert np.allclose(out_np, ref_bf16, atol=1e-4, rtol=1e-4), (
            f"mismatch vs bf16-operand reference (tile_rows={tile_rows})")
        # Loose sanity check vs the full-precision conv.
        assert np.allclose(out_np, ref_full, atol=5e-2, rtol=5e-2), (
            f"mismatch vs full-precision reference (tile_rows={tile_rows})")

    print("KERNEL_OK")
</pallas_src>

<mosaic_0001>
module attributes {stable_mosaic.version = 11 : i64} {
  func.func @_rdb_conv_kernel(%arg0: i32, %arg1: i32, %arg2: memref<2x4x256xf32, #tpu.memory_space<any>>, %arg3: memref<9x8x4xbf16, #tpu.memory_space<vmem>>, %arg4: memref<8x1xf32, #tpu.memory_space<vmem>>, %arg5: memref<1x12x128xf32, #tpu.memory_space<vmem>>, %arg6: memref<4x384xf32, #tpu.memory_space<vmem>>, %arg7: memref<3x!tpu.dma_semaphore, #tpu.memory_space<semaphore_mem>>) attributes {dimension_semantics = [#tpu.dimension_semantics<parallel>, #tpu.dimension_semantics<parallel>], iteration_bounds = array<i64: 2, 2>, scalar_prefetch = 0 : i64, scratch_operands = 2 : i64, tpu.core_type = #tpu.core_type<tc>, window_params = [{}, {pipeline_mode = #tpu.pipeline_mode<synchronous>, transform_indices = @transform_1, window_bounds = array<i64: 9, 8, 4>}, {pipeline_mode = #tpu.pipeline_mode<synchronous>, transform_indices = @transform_2, window_bounds = array<i64: 8, 1>}, {transform_indices = @transform_3, window_bounds = array<i64: 1, 12, 128>}]} {
    %c128_i32 = arith.constant 128 : i32
    %0 = arith.muli %arg1, %c128_i32 : i32
    %1 = tpu.assume_multiple %0, 128 : i32
    %c128_i32_0 = arith.constant 128 : i32
    %2 = arith.subi %1, %c128_i32_0 : i32
    %c0_i32 = arith.constant 0 : i32
    %3 = arith.maxsi %2, %c0_i32 : i32
    %4 = tpu.assume_multiple %3, 128 : i32
    %c128_i32_1 = arith.constant 128 : i32
    %5 = arith.addi %1, %c128_i32_1 : i32
    %c128_i32_2 = arith.constant 128 : i32
    %6 = arith.minsi %5, %c128_i32_2 : i32
    %7 = tpu.assume_multiple %6, 128 : i32
    %c0_i32_3 = arith.constant 0 : i32
    %c0_i32_4 = arith.constant 0 : i32
    %8 = tpu.memref_slice %arg2[%arg0, %c0_i32_4, %4] : memref<2x4x256xf32, #tpu.memory_space<any>> -> memref<1x4x128xf32, #tpu.memory_space<any>>
    %9 = tpu.memref_squeeze %8 : memref<1x4x128xf32, #tpu.memory_space<any>> -> memref<4x128xf32, #tpu.memory_space<any>>
    %c0_i32_5 = arith.constant 0 : i32
    %c0_i32_6 = arith.constant 0 : i32
    %10 = tpu.memref_slice %arg6[%c0_i32_5, %c0_i32_6] : memref<4x384xf32, #tpu.memory_space<vmem>> -> memref<4x128xf32, #tpu.memory_space<vmem>>
    %11 = tpu.memref_slice %arg7[%c0_i32_3] : memref<3x!tpu.dma_semaphore, #tpu.memory_space<semaphore_mem>> -> memref<1x!tpu.dma_semaphore, #tpu.memory_space<semaphore_mem>>
    %12 = tpu.memref_squeeze %11 : memref<1x!tpu.dma_semaphore, #tpu.memory_space<semaphore_mem>> -> memref<!tpu.dma_semaphore, #tpu.memory_space<semaphore_mem>>
    tpu.enqueue_dma source(%9 : memref<4x128xf32, #tpu.memory_space<any>>) target(%10 : memref<4x128xf32, #tpu.memory_space<vmem>>) target_semaphore(%12 : memref<!tpu.dma_semaphore, #tpu.memory_space<semaphore_mem>>)
    %c1_i32 = arith.constant 1 : i32
    %c0_i32_7 = arith.constant 0 : i32
    %13 = tpu.memref_slice %arg2[%arg0, %c0_i32_7, %1] : memref<2x4x256xf32, #tpu.memory_space<any>> -> memref<1x4x128xf32, #tpu.memory_space<any>>
    %14 = tpu.memref_squeeze %13 : memref<1x4x128xf32, #tpu.memory_space<any>> -> memref<4x128xf32, #tpu.memory_space<any>>
    %c0_i32_8 = arith.constant 0 : i32
    %c128_i32_9 = arith.constant 128 : i32
    %15 = tpu.memref_slice %arg6[%c0_i32_8, %c128_i32_9] : memref<4x384xf32, #tpu.memory_space<vmem>> -> memref<4x128xf32, #tpu.memory_space<vmem>>
    %16 = tpu.memref_slice %arg7[%c1_i32] : memref<3x!tpu.dma_semaphore, #tpu.memory_space<semaphore_mem>> -> memref<1x!tpu.dma_semaphore, #tpu.memory_space<semaphore_mem>>
    %17 = tpu.memref_squeeze %16 : memref<1x!tpu.dma_semaphore, #tpu.memory_space<semaphore_mem>> -> memref<!tpu.dma_semaphore, #tpu.memory_space<semaphore_mem>>
    tpu.enqueue_dma source(%14 : memref<4x128xf32, #tpu.memory_space<any>>) target(%15 : memref<4x128xf32, #tpu.memory_space<vmem>>) target_semaphore(%17 : memref<!tpu.dma_semaphore, #tpu.memory_space<semaphore_mem>>)
    %c2_i32 = arith.constant 2 : i32
    %c0_i32_10 = arith.constant 0 : i32
    %18 = tpu.memref_slice %arg2[%arg0, %c0_i32_10, %7] : memref<2x4x256xf32, #tpu.memory_space<any>> -> memref<1x4x128xf32, #tpu.memory_space<any>>
    %19 = tpu.memref_squeeze %18 : memref<1x4x128xf32, #tpu.memory_space<any>> -> memref<4x128xf32, #tpu.memory_space<any>>
    %c0_i32_11 = arith.constant 0 : i32
    %c256_i32 = arith.constant 256 : i32
    %20 = tpu.memref_slice %arg6[%c0_i32_11, %c256_i32] : memref<4x384xf32, #tpu.memory_space<vmem>> -> memref<4x128xf32, #tpu.memory_space<vmem>>
    %21 = tpu.memref_slice %arg7[%c2_i32] : memref<3x!tpu.dma_semaphore, #tpu.memory_space<semaphore_mem>> -> memref<1x!tpu.dma_semaphore, #tpu.memory_space<semaphore_mem>>
    %22 = tpu.memref_squeeze %21 : memref<1x!tpu.dma_semaphore, #tpu.memory_space<semaphore_mem>> -> memref<!tpu.dma_semaphore, #tpu.memory_space<semaphore_mem>>
    tpu.enqueue_dma source(%19 : memref<4x128xf32, #tpu.memory_space<any>>) target(%20 : memref<4x128xf32, #tpu.memory_space<vmem>>) target_semaphore(%22 : memref<!tpu.dma_semaphore, #tpu.memory_space<semaphore_mem>>)
    %c0_i32_12 = arith.constant 0 : i32
    %c0_i32_13 = arith.constant 0 : i32
    %23 = tpu.memref_slice %arg2[%arg0, %c0_i32_13, %4] : memref<2x4x256xf32, #tpu.memory_space<any>> -> memref<1x4x128xf32, #tpu.memory_space<any>>
    %24 = tpu.memref_squeeze %23 : memref<1x4x128xf32, #tpu.memory_space<any>> -> memref<4x128xf32, #tpu.memory_space<any>>
    %c0_i32_14 = arith.constant 0 : i32
    %c0_i32_15 = arith.constant 0 : i32
    %25 = tpu.memref_slice %arg6[%c0_i32_14, %c0_i32_15] : memref<4x384xf32, #tpu.memory_space<vmem>> -> memref<4x128xf32, #tpu.memory_space<vmem>>
    %26 = tpu.memref_slice %arg7[%c0_i32_12] : memref<3x!tpu.dma_semaphore, #tpu.memory_space<semaphore_mem>> -> memref<1x!tpu.dma_semaphore, #tpu.memory_space<semaphore_mem>>
    %27 = tpu.memref_squeeze %26 : memref<1x!tpu.dma_semaphore, #tpu.memory_space<semaphore_mem>> -> memref<!tpu.dma_semaphore, #tpu.memory_space<semaphore_mem>>
    tpu.wait_dma2 semaphore(%27 : memref<!tpu.dma_semaphore, #tpu.memory_space<semaphore_mem>>) src(%24 : memref<4x128xf32, #tpu.memory_space<any>>) dst(%25 : memref<4x128xf32, #tpu.memory_space<vmem>>)
    %c1_i32_16 = arith.constant 1 : i32
    %c0_i32_17 = arith.constant 0 : i32
    %28 = tpu.memref_slice %arg2[%arg0, %c0_i32_17, %1] : memref<2x4x256xf32, #tpu.memory_space<any>> -> memref<1x4x128xf32, #tpu.memory_space<any>>
    %29 = tpu.memref_squeeze %28 : memref<1x4x128xf32, #tpu.memory_space<any>> -> memref<4x128xf32, #tpu.memory_space<any>>
    %c0_i32_18 = arith.constant 0 : i32
    %c128_i32_19 = arith.constant 128 : i32
    %30 = tpu.memref_slice %arg6[%c0_i32_18, %c128_i32_19] : memref<4x384xf32, #tpu.memory_space<vmem>> -> memref<4x128xf32, #tpu.memory_space<vmem>>
    %31 = tpu.memref_slice %arg7[%c1_i32_16] : memref<3x!tpu.dma_semaphore, #tpu.memory_space<semaphore_mem>> -> memref<1x!tpu.dma_semaphore, #tpu.memory_space<semaphore_mem>>
    %32 = tpu.memref_squeeze %31 : memref<1x!tpu.dma_semaphore, #tpu.memory_space<semaphore_mem>> -> memref<!tpu.dma_semaphore, #tpu.memory_space<semaphore_mem>>
    tpu.wait_dma2 semaphore(%32 : memref<!tpu.dma_semaphore, #tpu.memory_space<semaphore_mem>>) src(%29 : memref<4x128xf32, #tpu.memory_space<any>>) dst(%30 : memref<4x128xf32, #tpu.memory_space<vmem>>)
    %c2_i32_20 = arith.constant 2 : i32
    %c0_i32_21 = arith.constant 0 : i32
    %33 = tpu.memref_slice %arg2[%arg0, %c0_i32_21, %7] : memref<2x4x256xf32, #tpu.memory_space<any>> -> memref<1x4x128xf32, #tpu.memory_space<any>>
    %34 = tpu.memref_squeeze %33 : memref<1x4x128xf32, #tpu.memory_space<any>> -> memref<4x128xf32, #tpu.memory_space<any>>
    %c0_i32_22 = arith.constant 0 : i32
    %c256_i32_23 = arith.constant 256 : i32
    %35 = tpu.memref_slice %arg6[%c0_i32_22, %c256_i32_23] : memref<4x384xf32, #tpu.memory_space<vmem>> -> memref<4x128xf32, #tpu.memory_space<vmem>>
    %36 = tpu.memref_slice %arg7[%c2_i32_20] : memref<3x!tpu.dma_semaphore, #tpu.memory_space<semaphore_mem>> -> memref<1x!tpu.dma_semaphore, #tpu.memory_space<semaphore_mem>>
    %37 = tpu.memref_squeeze %36 : memref<1x!tpu.dma_semaphore, #tpu.memory_space<semaphore_mem>> -> memref<!tpu.dma_semaphore, #tpu.memory_space<semaphore_mem>>
    tpu.wait_dma2 semaphore(%37 : memref<!tpu.dma_semaphore, #tpu.memory_space<semaphore_mem>>) src(%34 : memref<4x128xf32, #tpu.memory_space<any>>) dst(%35 : memref<4x128xf32, #tpu.memory_space<vmem>>)
    %c0_i32_24 = arith.constant 0 : i32
    %38 = arith.cmpi eq, %arg1, %c0_i32_24 : i32
    %39 = arith.extui %38 : i1 to i32
    %c0_i32_25 = arith.constant 0 : i32
    %40 = arith.cmpi ne, %39, %c0_i32_25 : i32
    scf.if %40 {
      %cst_78 = arith.constant 0.000000e+00 : f32
      %169 = vector.broadcast %cst_78 : f32 to vector<4x128xf32>
      %c0_79 = arith.constant 0 : index
      %c0_80 = arith.constant 0 : index
      %170 = vector.load %arg6[%c0_79, %c0_80] : memref<4x384xf32, #tpu.memory_space<vmem>>, vector<4x128xf32>
      tpu.vector_store %arg6[%c0_79, %c0_80], %169 {strides = array<i32>} : memref<4x384xf32, #tpu.memory_space<vmem>>, vector<4x128xf32>,
    } else {
    }
    %c1_i32_26 = arith.constant 1 : i32
    %41 = arith.cmpi eq, %arg1, %c1_i32_26 : i32
    %42 = arith.extui %41 : i1 to i32
    %c0_i32_27 = arith.constant 0 : i32
    %43 = arith.cmpi ne, %42, %c0_i32_27 : i32
    scf.if %43 {
      %cst_78 = arith.constant 0.000000e+00 : f32
      %169 = vector.broadcast %cst_78 : f32 to vector<4x128xf32>
      %c0_79 = arith.constant 0 : index
      %c256 = arith.constant 256 : index
      %170 = vector.load %arg6[%c0_79, %c256] : memref<4x384xf32, #tpu.memory_space<vmem>>, vector<4x128xf32>
      tpu.vector_store %arg6[%c0_79, %c256], %169 {strides = array<i32>} : memref<4x384xf32, #tpu.memory_space<vmem>>, vector<4x128xf32>,
    } else {
    }
    %44 = tpu.iota {dimensions = array<i32: 1>} : vector<1x128xi32>
    %c16_i32 = arith.constant 16 : i32
    %c0_i32_28 = arith.constant 0 : i32
    %45 = arith.cmpi eq, %c16_i32, %c0_i32_28 : i32
    %c1_i32_29 = arith.constant 1 : i32
    %46 = arith.select %45, %c1_i32_29, %c16_i32 : i32
    %47 = vector.broadcast %46 : i32 to vector<1x128xi32>
    %48 = arith.remsi %44, %47 : vector<1x128xi32>
    %c0_i32_30 = arith.constant 0 : i32
    %49 = vector.broadcast %c0_i32_30 : i32 to vector<1x128xi32>
    %50 = arith.cmpi ne, %48, %49 : vector<1x128xi32>
    %c0_i32_31 = arith.constant 0 : i32
    %51 = vector.broadcast %c0_i32_31 : i32 to vector<1x128xi32>
    %52 = arith.cmpi slt, %48, %51 : vector<1x128xi32>
    %c0_i32_32 = arith.constant 0 : i32
    %53 = arith.cmpi slt, %46, %c0_i32_32 : i32
    %54 = vector.broadcast %53 : i1 to vector<1x128xi1>
    %55 = vector.broadcast %54 : vector<1x128xi1> to vector<1x128xi1>
    %56 = arith.xori %52, %55 : vector<1x128xi1>
    %57 = arith.andi %56, %50 : vector<1x128xi1>
    %58 = vector.broadcast %46 : i32 to vector<1x128xi32>
    %59 = arith.addi %48, %58 : vector<1x128xi32>
    %60 = arith.select %57, %59, %48 : vector<1x128xi1>, vector<1x128xi32>
    %c1_i32_33 = arith.constant 1 : i32
    %61 = vector.broadcast %c1_i32_33 : i32 to vector<1x128xi32>
    %62 = arith.cmpi sge, %60, %61 : vector<1x128xi32>
    %c15_i32 = arith.constant 15 : i32
    %63 = vector.broadcast %c15_i32 : i32 to vector<1x128xi32>
    %64 = arith.cmpi slt, %60, %63 : vector<1x128xi32>
    %c0 = arith.constant 0 : index
    %c0_34 = arith.constant 0 : index
    %65 = vector.load %arg6[%c0, %c0_34] : memref<4x384xf32, #tpu.memory_space<vmem>>, vector<4x384xf32>
    %c273_i32 = arith.constant 273 : i32
    %66 = tpu.dynamic_rotate %65 by %c273_i32 dim 1 : vector<4x384xf32>, i32 -> vector<4x384xf32>
    %67 = vector.extract_strided_slice %66 {offsets = [0, 0], sizes = [4, 128], strides = [1, 1]} : vector<4x384xf32> to vector<4x128xf32>
    %c0_i32_35 = arith.constant 0 : i32
    %68 = arith.sitofp %c0_i32_35 : i32 to f32
    %69 = vector.shape_cast %62 : vector<1x128xi1> to vector<1x128xi1>
    %70 = vector.broadcast %69 : vector<1x128xi1> to vector<4x128xi1>
    %71 = vector.broadcast %68 : f32 to vector<4x128xf32>
    %72 = arith.select %70, %67, %71 : vector<4x128xi1>, vector<4x128xf32>
    %c0_36 = arith.constant 0 : index
    %c0_37 = arith.constant 0 : index
    %c0_38 = arith.constant 0 : index
    %73 = vector.load %arg3[%c0_36, %c0_37, %c0_38] : memref<9x8x4xbf16, #tpu.memory_space<vmem>>, vector<1x8x4xbf16>
    %74 = vector.shape_cast %73 : vector<1x8x4xbf16> to vector<8x4xbf16>
    %75 = arith.truncf %72 : vector<4x128xf32> to vector<4x128xbf16>
    %cst = arith.constant dense<0.000000e+00> : vector<8x128xf32>
    %76 = tpu.matmul %74, %75, %cst {dimension_numbers = #tpu.dot_dimension_numbers<[1], [0], [0], [1], [0, 0, 1, 1], [], []>} : vector<8x4xbf16>, vector<4x128xbf16>, vector<8x128xf32> -> vector<8x128xf32>
    %c272_i32 = arith.constant 272 : i32
    %77 = tpu.dynamic_rotate %65 by %c272_i32 dim 1 : vector<4x384xf32>, i32 -> vector<4x384xf32>
    %78 = vector.extract_strided_slice %77 {offsets = [0, 0], sizes = [4, 128], strides = [1, 1]} : vector<4x384xf32> to vector<4x128xf32>
    %c1 = arith.constant 1 : index
    %c0_39 = arith.constant 0 : index
    %c0_40 = arith.constant 0 : index
    %79 = vector.load %arg3[%c1, %c0_39, %c0_40] : memref<9x8x4xbf16, #tpu.memory_space<vmem>>, vector<1x8x4xbf16>
    %80 = vector.shape_cast %79 : vector<1x8x4xbf16> to vector<8x4xbf16>
    %81 = arith.truncf %78 : vector<4x128xf32> to vector<4x128xbf16>
    %cst_41 = arith.constant dense<0.000000e+00> : vector<8x128xf32>
    %82 = tpu.matmul %80, %81, %cst_41 {dimension_numbers = #tpu.dot_dimension_numbers<[1], [0], [0], [1], [0, 0, 1, 1], [], []>} : vector<8x4xbf16>, vector<4x128xbf16>, vector<8x128xf32> -> vector<8x128xf32>
    %83 = arith.addf %76, %82 : vector<8x128xf32>
    %c271_i32 = arith.constant 271 : i32
    %84 = tpu.dynamic_rotate %65 by %c271_i32 dim 1 : vector<4x384xf32>, i32 -> vector<4x384xf32>
    %85 = vector.extract_strided_slice %84 {offsets = [0, 0], sizes = [4, 128], strides = [1, 1]} : vector<4x384xf32> to vector<4x128xf32>
    %c0_i32_42 = arith.constant 0 : i32
    %86 = arith.sitofp %c0_i32_42 : i32 to f32
    %87 = vector.shape_cast %64 : vector<1x128xi1> to vector<1x128xi1>
    %88 = vector.broadcast %87 : vector<1x128xi1> to vector<4x128xi1>
    %89 = vector.broadcast %86 : f32 to vector<4x128xf32>
    %90 = arith.select %88, %85, %89 : vector<4x128xi1>, vector<4x128xf32>
    %c2 = arith.constant 2 : index
    %c0_43 = arith.constant 0 : index
    %c0_44 = arith.constant 0 : index
    %91 = vector.load %arg3[%c2, %c0_43, %c0_44] : memref<9x8x4xbf16, #tpu.memory_space<vmem>>, vector<1x8x4xbf16>
    %92 = vector.shape_cast %91 : vector<1x8x4xbf16> to vector<8x4xbf16>
    %93 = arith.truncf %90 : vector<4x128xf32> to vector<4x128xbf16>
    %cst_45 = arith.constant dense<0.000000e+00> : vector<8x128xf32>
    %94 = tpu.matmul %92, %93, %cst_45 {dimension_numbers = #tpu.dot_dimension_numbers<[1], [0], [0], [1], [0, 0, 1, 1], [], []>} : vector<8x4xbf16>, vector<4x128xbf16>, vector<8x128xf32> -> vector<8x128xf32>
    %95 = arith.addf %83, %94 : vector<8x128xf32>
    %c257_i32 = arith.constant 257 : i32
    %96 = tpu.dynamic_rotate %65 by %c257_i32 dim 1 : vector<4x384xf32>, i32 -> vector<4x384xf32>
    %97 = vector.extract_strided_slice %96 {offsets = [0, 0], sizes = [4, 128], strides = [1, 1]} : vector<4x384xf32> to vector<4x128xf32>
    %c0_i32_46 = arith.constant 0 : i32
    %98 = arith.sitofp %c0_i32_46 : i32 to f32
    %99 = vector.shape_cast %62 : vector<1x128xi1> to vector<1x128xi1>
    %100 = vector.broadcast %99 : vector<1x128xi1> to vector<4x128xi1>
    %101 = vector.broadcast %98 : f32 to vector<4x128xf32>
    %102 = arith.select %100, %97, %101 : vector<4x128xi1>, vector<4x128xf32>
    %c3 = arith.constant 3 : index
    %c0_47 = arith.constant 0 : index
    %c0_48 = arith.constant 0 : index
    %103 = vector.load %arg3[%c3, %c0_47, %c0_48] : memref<9x8x4xbf16, #tpu.memory_space<vmem>>, vector<1x8x4xbf16>
    %104 = vector.shape_cast %103 : vector<1x8x4xbf16> to vector<8x4xbf16>
    %105 = arith.truncf %102 : vector<4x128xf32> to vector<4x128xbf16>
    %cst_49 = arith.constant dense<0.000000e+00> : vector<8x128xf32>
    %106 = tpu.matmul %104, %105, %cst_49 {dimension_numbers = #tpu.dot_dimension_numbers<[1], [0], [0], [1], [0, 0, 1, 1], [], []>} : vector<8x4xbf16>, vector<4x128xbf16>, vector<8x128xf32> -> vector<8x128xf32>
    %107 = arith.addf %95, %106 : vector<8x128xf32>
    %c256_i32_50 = arith.constant 256 : i32
    %108 = tpu.dynamic_rotate %65 by %c256_i32_50 dim 1 : vector<4x384xf32>, i32 -> vector<4x384xf32>
    %109 = vector.extract_strided_slice %108 {offsets = [0, 0], sizes = [4, 128], strides = [1, 1]} : vector<4x384xf32> to vector<4x128xf32>
    %c4 = arith.constant 4 : index
    %c0_51 = arith.constant 0 : index
    %c0_52 = arith.constant 0 : index
    %110 = vector.load %arg3[%c4, %c0_51, %c0_52] : memref<9x8x4xbf16, #tpu.memory_space<vmem>>, vector<1x8x4xbf16>
    %111 = vector.shape_cast %110 : vector<1x8x4xbf16> to vector<8x4xbf16>
    %112 = arith.truncf %109 : vector<4x128xf32> to vector<4x128xbf16>
    %cst_53 = arith.constant dense<0.000000e+00> : vector<8x128xf32>
    %113 = tpu.matmul %111, %112, %cst_53 {dimension_numbers = #tpu.dot_dimension_numbers<[1], [0], [0], [1], [0, 0, 1, 1], [], []>} : vector<8x4xbf16>, vector<4x128xbf16>, vector<8x128xf32> -> vector<8x128xf32>
    %114 = arith.addf %107, %113 : vector<8x128xf32>
    %c255_i32 = arith.constant 255 : i32
    %115 = tpu.dynamic_rotate %65 by %c255_i32 dim 1 : vector<4x384xf32>, i32 -> vector<4x384xf32>
    %116 = vector.extract_strided_slice %115 {offsets = [0, 0], sizes = [4, 128], strides = [1, 1]} : vector<4x384xf32> to vector<4x128xf32>
    %c0_i32_54 = arith.constant 0 : i32
    %117 = arith.sitofp %c0_i32_54 : i32 to f32
    %118 = vector.shape_cast %64 : vector<1x128xi1> to vector<1x128xi1>
    %119 = vector.broadcast %118 : vector<1x128xi1> to vector<4x128xi1>
    %120 = vector.broadcast %117 : f32 to vector<4x128xf32>
    %121 = arith.select %119, %116, %120 : vector<4x128xi1>, vector<4x128xf32>
    %c5 = arith.constant 5 : index
    %c0_55 = arith.constant 0 : index
    %c0_56 = arith.constant 0 : index
    %122 = vector.load %arg3[%c5, %c0_55, %c0_56] : memref<9x8x4xbf16, #tpu.memory_space<vmem>>, vector<1x8x4xbf16>
    %123 = vector.shape_cast %122 : vector<1x8x4xbf16> to vector<8x4xbf16>
    %124 = arith.truncf %121 : vector<4x128xf32> to vector<4x128xbf16>
    %cst_57 = arith.constant dense<0.000000e+00> : vector<8x128xf32>
    %125 = tpu.matmul %123, %124, %cst_57 {dimension_numbers = #tpu.dot_dimension_numbers<[1], [0], [0], [1], [0, 0, 1, 1], [], []>} : vector<8x4xbf16>, vector<4x128xbf16>, vector<8x128xf32> -> vector<8x128xf32>
    %126 = arith.addf %114, %125 : vector<8x128xf32>
    %c241_i32 = arith.constant 241 : i32
    %127 = tpu.dynamic_rotate %65 by %c241_i32 dim 1 : vector<4x384xf32>, i32 -> vector<4x384xf32>
    %128 = vector.extract_strided_slice %127 {offsets = [0, 0], sizes = [4, 128], strides = [1, 1]} : vector<4x384xf32> to vector<4x128xf32>
    %c0_i32_58 = arith.constant 0 : i32
    %129 = arith.sitofp %c0_i32_58 : i32 to f32
    %130 = vector.shape_cast %62 : vector<1x128xi1> to vector<1x128xi1>
    %131 = vector.broadcast %130 : vector<1x128xi1> to vector<4x128xi1>
    %132 = vector.broadcast %129 : f32 to vector<4x128xf32>
    %133 = arith.select %131, %128, %132 : vector<4x128xi1>, vector<4x128xf32>
    %c6 = arith.constant 6 : index
    %c0_59 = arith.constant 0 : index
    %c0_60 = arith.constant 0 : index
    %134 = vector.load %arg3[%c6, %c0_59, %c0_60] : memref<9x8x4xbf16, #tpu.memory_space<vmem>>, vector<1x8x4xbf16>
    %135 = vector.shape_cast %134 : vector<1x8x4xbf16> to vector<8x4xbf16>
    %136 = arith.truncf %133 : vector<4x128xf32> to vector<4x128xbf16>
    %cst_61 = arith.constant dense<0.000000e+00> : vector<8x128xf32>
    %137 = tpu.matmul %135, %136, %cst_61 {dimension_numbers = #tpu.dot_dimension_numbers<[1], [0], [0], [1], [0, 0, 1, 1], [], []>} : vector<8x4xbf16>, vector<4x128xbf16>, vector<8x128xf32> -> vector<8x128xf32>
    %138 = arith.addf %126, %137 : vector<8x128xf32>
    %c240_i32 = arith.constant 240 : i32
    %139 = tpu.dynamic_rotate %65 by %c240_i32 dim 1 : vector<4x384xf32>, i32 -> vector<4x384xf32>
    %140 = vector.extract_strided_slice %139 {offsets = [0, 0], sizes = [4, 128], strides = [1, 1]} : vector<4x384xf32> to vector<4x128xf32>
    %c7 = arith.constant 7 : index
    %c0_62 = arith.constant 0 : index
    %c0_63 = arith.constant 0 : index
    %141 = vector.load %arg3[%c7, %c0_62, %c0_63] : memref<9x8x4xbf16, #tpu.memory_space<vmem>>, vector<1x8x4xbf16>
    %142 = vector.shape_cast %141 : vector<1x8x4xbf16> to vector<8x4xbf16>
    %143 = arith.truncf %140 : vector<4x128xf32> to vector<4x128xbf16>
    %cst_64 = arith.constant dense<0.000000e+00> : vector<8x128xf32>
    %144 = tpu.matmul %142, %143, %cst_64 {dimension_numbers = #tpu.dot_dimension_numbers<[1], [0], [0], [1], [0, 0, 1, 1], [], []>} : vector<8x4xbf16>, vector<4x128xbf16>, vector<8x128xf32> -> vector<8x128xf32>
    %145 = arith.addf %138, %144 : vector<8x128xf32>
    %c239_i32 = arith.constant 239 : i32
    %146 = tpu.dynamic_rotate %65 by %c239_i32 dim 1 : vector<4x384xf32>, i32 -> vector<4x384xf32>
    %147 = vector.extract_strided_slice %146 {offsets = [0, 0], sizes = [4, 128], strides = [1, 1]} : vector<4x384xf32> to vector<4x128xf32>
    %c0_i32_65 = arith.constant 0 : i32
    %148 = arith.sitofp %c0_i32_65 : i32 to f32
    %149 = vector.shape_cast %64 : vector<1x128xi1> to vector<1x128xi1>
    %150 = vector.broadcast %149 : vector<1x128xi1> to vector<4x128xi1>
    %151 = vector.broadcast %148 : f32 to vector<4x128xf32>
    %152 = arith.select %150, %147, %151 : vector<4x128xi1>, vector<4x128xf32>
    %c8 = arith.constant 8 : index
    %c0_66 = arith.constant 0 : index
    %c0_67 = arith.constant 0 : index
    %153 = vector.load %arg3[%c8, %c0_66, %c0_67] : memref<9x8x4xbf16, #tpu.memory_space<vmem>>, vector<1x8x4xbf16>
    %154 = vector.shape_cast %153 : vector<1x8x4xbf16> to vector<8x4xbf16>
    %155 = arith.truncf %152 : vector<4x128xf32> to vector<4x128xbf16>
    %cst_68 = arith.constant dense<0.000000e+00> : vector<8x128xf32>
    %156 = tpu.matmul %154, %155, %cst_68 {dimension_numbers = #tpu.dot_dimension_numbers<[1], [0], [0], [1], [0, 0, 1, 1], [], []>} : vector<8x4xbf16>, vector<4x128xbf16>, vector<8x128xf32> -> vector<8x128xf32>
    %157 = arith.addf %145, %156 : vector<8x128xf32>
    %c0_69 = arith.constant 0 : index
    %c0_70 = arith.constant 0 : index
    %158 = vector.load %arg4[%c0_69, %c0_70] : memref<8x1xf32, #tpu.memory_space<vmem>>, vector<8x1xf32>
    %159 = vector.broadcast %158 : vector<8x1xf32> to vector<8x128xf32>
    %160 = arith.addf %157, %159 : vector<8x128xf32>
    %cst_71 = arith.constant 0.000000e+00 : f32
    %161 = vector.broadcast %cst_71 : f32 to vector<8x128xf32>
    %162 = arith.maximumf %160, %161 : vector<8x128xf32>
    %c0_72 = arith.constant 0 : index
    %c0_73 = arith.constant 0 : index
    %c0_74 = arith.constant 0 : index
    %163 = vector.load %arg5[%c0_72, %c0_73, %c0_74] : memref<1x12x128xf32, #tpu.memory_space<vmem>>, vector<1x4x128xf32>
    %164 = vector.shape_cast %163 : vector<1x4x128xf32> to vector<4x128xf32>
    %165 = vector.shape_cast %109 : vector<4x128xf32> to vector<1x4x128xf32>
    tpu.vector_store %arg5[%c0_72, %c0_73, %c0_74], %165 {strides = array<i32>} : memref<1x12x128xf32, #tpu.memory_space<vmem>>, vector<1x4x128xf32>,
    %c0_75 = arith.constant 0 : index
    %c4_76 = arith.constant 4 : index
    %c0_77 = arith.constant 0 : index
    %166 = vector.load %arg5[%c0_75, %c4_76, %c0_77] : memref<1x12x128xf32, #tpu.memory_space<vmem>>, vector<1x8x128xf32>
    %167 = vector.shape_cast %166 : vector<1x8x128xf32> to vector<8x128xf32>
    %168 = vector.shape_cast %162 : vector<8x128xf32> to vector<1x8x128xf32>
    tpu.vector_store %arg5[%c0_75, %c4_76, %c0_77], %168 {strides = array<i32>} : memref<1x12x128xf32, #tpu.memory_space<vmem>>, vector<1x8x128xf32>,
    return
  }
  func.func @transform_1(%arg0: i32, %arg1: i32) -> (i32, i32, i32) {
    %c0_i32 = arith.constant 0 : i32
    %c0_i32_0 = arith.constant 0 : i32
    %c0_i32_1 = arith.constant 0 : i32
    %c0_i32_2 = arith.constant 0 : i32
    return %c0_i32, %c0_i32_0, %c0_i32_1 : i32, i32, i32
  }
  func.func @transform_2(%arg0: i32, %arg1: i32) -> (i32, i32) {
    %c0_i32 = arith.constant 0 : i32
    %c0_i32_0 = arith.constant 0 : i32
    %c0_i32_1 = arith.constant 0 : i32
    return %c0_i32, %c0_i32_0 : i32, i32
  }
  func.func @transform_3(%arg0: i32, %arg1: i32) -> (i32, i32, i32) {
    %c0_i32 = arith.constant 0 : i32
    %c0_i32_0 = arith.constant 0 : i32
    return %arg0, %c0_i32, %arg1 : i32, i32, i32
  }
}

</mosaic_0001>

<llo_original>
// kernel: tpu_custom_call.1
$region0: #{tpu_custom_call.1}
  #allocation0 [shape = 'u32[]', space=smem, size = 0x4, offset = 0x4, fixed_abs, tag = 'smem constant byte address 0x4 - core index']
  #allocation1 [shape = 'u32[144,128]{1,0:T(1,128)}', space=vmem, size = 0x12000, scoped, tag = 'internal scratch']
  #allocation2 [shape = 'f32[4,384]{1,0:T(4,128)}', space=vmem, size = 0x1800, scoped, tag = 'scratch operand']
  #allocation3 [shape = 's32[3]{0}', space=sflag, size = 0xc, scoped, tag = 'scratch operand']
  #allocation5 [shape = 's32[]', space=sflag, size = 0x4, offset = 0, fixed_abs, tag = 'sflag constant byte address 0x0 - dummy sync flag']
  #allocation6 [shape = 's32[]', space=sflag, size = 0x4, offset = 0, fixed_abs, tag = 'sflag constant byte address 0x0 - dummy sync flag']
  #allocation7 [shape = 's32[]', space=sflag, size = 0x4, offset = 0, fixed_abs, tag = 'sflag constant byte address 0x0 - dummy sync flag']
  %s0 = inlined_call_operand.vmem [shape: f32[2,4,256], index: 0, kind: input, shape index: {}]
  %s1 = inlined_call_operand.vmem [shape: bf16[9,8,4], index: 1, kind: input, shape index: {}]
  %s2 = inlined_call_operand.vmem [shape: f32[8,1], index: 2, kind: input, shape index: {}]
  %s3 = inlined_call_operand.vmem [shape: f32[2,12,256], index: 3, kind: output, shape index: {}]
  %s4 = sld [smem:[#allocation0]]
  $region173: #{tpu_custom_call.1} parent=0
    _
  %s6 = ssub.s32 1, %s4
  %s7 = scalar_select 0, %s6, %s4
  $region1: #{tpu_custom_call.1} parent=0
    #allocation4 [shape = 'u8[16384]{0}', space=vmem, size = 0x4000, scoped, tag = 'output window, operand 0']
    loop: start=0, step=1, limit=6
    $region2: #{tpu_custom_call.1} parent=1 // loop_pre_header
      _
    $region3: #{tpu_custom_call.1} parent=1 // loop_header
      %s9 = sphi 0, %s13
      %p10 = scmp.ge.s32.totalorder %s9, 6
      %s16 = sphi 0, %s28
      %s17 = sphi 0, %s24
      %s18 = sphi 0, %s16
      %s19 = sphi 0, %s17
      %s20 = sphi 0, %s18
      %s21 = sphi 0, %s19
      %s29 = sphi 0, %s29
      %s31 = sphi 0, %s29
      %s32 = sphi 0, %s31
      %s46 = sphi 0, %s32
      %s50 = sphi 0, %s50
      %s52 = sphi 0, %s50
      %s53 = sphi 0, %s52
      %s67 = sphi 0, %s53
      %s75 = sphi 0, %s77
      %s78 = sphi 0, %s75
      %s79 = sphi 0, %s78
      %s95 = sphi 0, %s79
    $region4: #{tpu_custom_call.1} parent=1 // loop_header_branch
      %12 = sbr.rel (%p10) target = $region8
    $region5: #{tpu_custom_call.1} parent=1 // loop_body
      %s14 = ssub.s32 %s9, 1
      %s15 = ssub.s32 %s9, 2
      %s22 = sadd.s32 1, %s17
      %p23 = scmp.ge.s32.totalorder %s22, 2
      %s24 = scalar_select %p23, 0, %s22
      %s25 = sadd.s32 1, %s16
      %s26 = scalar_select %p23, %s25, %s16
      %p27 = scmp.ge.s32.totalorder %s26, 2
      %s28 = scalar_select %p27, 0, %s26
      %s30 = sadd.s32 %s29, 1
      %p33 = scmp.eq.s32.totalorder %s9, 3
      %p34 = scmp.ne.s32.totalorder %s29, %s31
      %p35 = scmp.eq.s32.totalorder %s9, 0
      %p36 = por %p34, %p35
      %p37 = scmp.ne.s32.totalorder %s29, %s31
      %p38 = scmp.eq.s32.totalorder %s14, 3
      %p39 = por %p37, %p38
      %p40 = scmp.ne.s32.totalorder %s31, %s32
      %p41 = scmp.eq.s32.totalorder %s14, 0
      %p42 = por %p40, %p41
      %p43 = scmp.ne.s32.totalorder %s31, %s32
      %p44 = scmp.eq.s32.totalorder %s15, 3
      %p45 = por %p43, %p44
      %p47 = scmp.ne.s32.totalorder %s32, %s46
      %p48 = scmp.eq.s32.totalorder %s15, 0
      %p49 = por %p47, %p48
      %s51 = sadd.s32 %s50, 1
      %p54 = scmp.eq.s32.totalorder %s9, 3
      %p55 = scmp.ne.s32.totalorder %s50, %s52
      %p56 = scmp.eq.s32.totalorder %s9, 0
      %p57 = por %p55, %p56
      %p58 = scmp.ne.s32.totalorder %s50, %s52
      %p59 = scmp.eq.s32.totalorder %s14, 3
      %p60 = por %p58, %p59
      %p61 = scmp.ne.s32.totalorder %s52, %s53
      %p62 = scmp.eq.s32.totalorder %s14, 0
      %p63 = por %p61, %p62
      %p64 = scmp.ne.s32.totalorder %s52, %s53
      %p65 = scmp.eq.s32.totalorder %s15, 3
      %p66 = por %p64, %p65
      %p68 = scmp.ne.s32.totalorder %s53, %s67
      %p69 = scmp.eq.s32.totalorder %s15, 0
      %p70 = por %p68, %p69
      %s71 = ssub.s32 %s16, %s28
      %s72 = ssub.s32 %s17, %s24
      %s73 = sor.u32 %s71, %s72
      %p74 = scmp.eq.s32.totalorder %s73, 0
      %s76 = sadd.s32 %s75, 1
      %s77 = scalar_select %p74, %s75, %s76
      %p80 = pneg %p74
      %p81 = scmp.eq.s32.totalorder %s9, 3
      %p82 = por %p80, %p81
      %p83 = scmp.ne.s32.totalorder %s75, %s78
      %p84 = scmp.eq.s32.totalorder %s9, 0
      %p85 = por %p83, %p84
      %p86 = scmp.ne.s32.totalorder %s75, %s78
      %p87 = scmp.eq.s32.totalorder %s14, 3
      %p88 = por %p86, %p87
      %p89 = scmp.ne.s32.totalorder %s78, %s79
      %p90 = scmp.eq.s32.totalorder %s14, 0
      %p91 = por %p89, %p90
      %p92 = scmp.ne.s32.totalorder %s78, %s79
      %p93 = scmp.eq.s32.totalorder %s15, 3
      %p94 = por %p92, %p93
      %p96 = scmp.ne.s32.totalorder %s79, %s95
      %p97 = scmp.eq.s32.totalorder %s15, 0
      %p98 = por %p96, %p97
      %p99 = scmp.le.s32.totalorder 1, %s9
      %p100 = scmp.lt.s32.totalorder %s9, 5
      %p101 = pnand %p99, %p100
      %p102 = pneg %p101
      // Predicated region
      $region9: #{tpu_custom_call.1} parent=5 // pred_check
        _
      $region10: #{tpu_custom_call.1} parent=5 // pred_check_branch
        %104 = sbr.rel (%p101) target = $region12
      $region11: #{tpu_custom_call.1} parent=5 // pred_region
        %s105 = ssub.s32 %s9, 1
        // Predicated region
        $region13: #{tpu_custom_call.1} parent=11 // pred_check
          %p106 = pneg %p42
        $region14: #{tpu_custom_call.1} parent=11 // pred_check_branch
          %108 = sbr.rel (%p106) target = $region16
        $region15: #{tpu_custom_call.1} parent=11 // pred_region
          _
        $region16: #{tpu_custom_call.1} parent=11 // pred_fallthru
          _
        // Predicated region
        $region17: #{tpu_custom_call.1} parent=11 // pred_check
          %p109 = pneg %p63
        $region18: #{tpu_custom_call.1} parent=11 // pred_check_branch
          %111 = sbr.rel (%p109) target = $region20
        $region19: #{tpu_custom_call.1} parent=11 // pred_region
          _
        $region20: #{tpu_custom_call.1} parent=11 // pred_fallthru
          _
      $region12: #{tpu_custom_call.1} parent=5 // pred_fallthru
        _
      %p112 = scmp.lt.s32.totalorder %s9, 4
      // Predicated region
      $region21: #{tpu_custom_call.1} parent=5 // pred_check
        %p113 = pneg %p112
      $region22: #{tpu_custom_call.1} parent=5 // pred_check_branch
        %115 = sbr.rel (%p113) target = $region24
      $region23: #{tpu_custom_call.1} parent=5 // pred_region
        _
      $region24: #{tpu_custom_call.1} parent=5 // pred_fallthru
        _
      %p116 = scmp.le.s32.totalorder 1, %s9
      %p117 = scmp.lt.s32.totalorder %s9, 5
      %p118 = pnand %p116, %p117
      %p119 = pneg %p118
      // Predicated region
      $region25: #{tpu_custom_call.1} parent=5 // pred_check
        _
      $region26: #{tpu_custom_call.1} parent=5 // pred_check_branch
        %121 = sbr.rel (%p118) target = $region28
      $region27: #{tpu_custom_call.1} parent=5 // pred_region
        %s122 = ssub.s32 %s9, 1
        %p123 = pneg %p42
        %p124 = pneg %p39
        %p125 = pneg %p63
        %p126 = pneg %p60
        %p127 = pneg %p91
        %p128 = pneg %p88
        %s129 = sand.u32 %s78, 1
        %s130 = sand.u32 %s78, 1
        %s131 = smul.addr %s130, 16
        %s132 = scalar_lea.vmem [#allocation4], %s131
        %s134 = smul.u32 %s19, 128
        %s135 = ssub.s32 %s134, 128
        %p136 = scmp.gt.s32.totalorder %s135, 0
        %s137 = scalar_select %p136, %s135, 0
        %s138 = sadd.s32 %s134, 128
        %p139 = scmp.lt.s32.totalorder %s138, 128
        %s140 = scalar_select %p139, %s138, 128
        %s141 = sshra.s32 %s137, 7
        %s142 = sand.u32 %s137, 127
        %s143 = smul.u32 %s18, 2
        %s144 = sadd.s32 %s141, %s143
        %s145 = smul.addr %s144, 4
        %s146 = scalar_lea.vmem %s0, %s145
        %p148 = scmp.lt.u32.totalorder 4, 8
        %p149 = pneg %p148
        // Predicated region
        $region29: #{tpu_custom_call.1} parent=27 // pred_check
          _
        $region30: #{tpu_custom_call.1} parent=27 // pred_check_branch
          %151 = sbr.rel (%p148) target = $region32
        $region31: #{tpu_custom_call.1} parent=27 // pred_region
          %s166 = sand.u32 4, 7
          %p167 = scmp.eq.s32.totalorder %s166, 0
          %p168 = pneg %p167
          // Predicated region
          $region44: #{tpu_custom_call.1} parent=31 // pred_check
            _
          $region45: #{tpu_custom_call.1} parent=31 // pred_check_branch
            %170 = sbr.rel (%p167) target = $region47
          $region46: #{tpu_custom_call.1} parent=31 // pred_region
            %s171 = sand.u32 4, 7
            %s172 = ssub.s32 4, %s171
            %s173 = scalar_lea.vmem %s146, %s172
            %s174 = ssub.s32 4, %s171
            %s175 = scalar_lea.vmem [#allocation2], %s174
            %s176 = sshllo.u32 0, %s171
            loop: start=0, step=1, limit=1
            $region48: #{tpu_custom_call.1} parent=46 // loop_pre_header
              _
            $region49: #{tpu_custom_call.1} parent=46 // loop_header
              %s178 = sphi 0, %s182
              %p179 = scmp.ge.s32.totalorder %s178, 1
              %s183 = sphi %s173, %s173
              %s184 = sphi %s175, %s175
            $region50: #{tpu_custom_call.1} parent=46 // loop_header_branch
              %181 = sbr.rel (%p179) target = $region54
            $region51: #{tpu_custom_call.1} parent=46 // loop_body
              %v185 = vld [vmem:[%s183] sm:%s176]
              %186 = vst [vmem:[%s184] sm:%s176] %v185
            $region52: #{tpu_custom_call.1} parent=46 // loop_footer
              %s182 = sadd.s32 1, %s178
            $region53: #{tpu_custom_call.1} parent=46 // loop_footer_branch
              %177 = sbr.rel target = $region49
            $region54: #{tpu_custom_call.1} parent=46 // loop_exit
              _
          $region47: #{tpu_custom_call.1} parent=31 // pred_fallthru
            _
        $region32: #{tpu_custom_call.1} parent=27 // pred_fallthru
          _
        // Predicated region
        $region33: #{tpu_custom_call.1} parent=27 // pred_check
          %p152 = pneg %p148
        $region34: #{tpu_custom_call.1} parent=27 // pred_check_branch
          %154 = sbr.rel (%p152) target = $region36
        $region35: #{tpu_custom_call.1} parent=27 // pred_region
          %s155 = sshllo.u32 0, 4
          loop: start=0, step=1, limit=1
          $region37: #{tpu_custom_call.1} parent=35 // loop_pre_header
            _
          $region38: #{tpu_custom_call.1} parent=35 // loop_header
            %s157 = sphi 0, %s161
            %p158 = scmp.ge.s32.totalorder %s157, 1
            %s162 = sphi %s146, %s146
            %s163 = sphi [#allocation2], [#allocation2]
          $region39: #{tpu_custom_call.1} parent=35 // loop_header_branch
            %160 = sbr.rel (%p158) target = $region43
          $region40: #{tpu_custom_call.1} parent=35 // loop_body
            %v164 = vld [vmem:[%s162] sm:%s155]
            %165 = vst [vmem:[%s163] sm:%s155] %v164
          $region41: #{tpu_custom_call.1} parent=35 // loop_footer
            %s161 = sadd.s32 1, %s157
          $region42: #{tpu_custom_call.1} parent=35 // loop_footer_branch
            %156 = sbr.rel target = $region38
          $region43: #{tpu_custom_call.1} parent=35 // loop_exit
            _
        $region36: #{tpu_custom_call.1} parent=27 // pred_fallthru
          _
        // Predicated region
        $region55: #{tpu_custom_call.1} parent=27 // pred_check
          _
        $region56: #{tpu_custom_call.1} parent=27 // pred_check_branch
          %189 = sbr.rel (0) target = $region58
        $region57: #{tpu_custom_call.1} parent=27 // pred_region
          %190 = vsyncadd [#allocation3], 64
        $region58: #{tpu_custom_call.1} parent=27 // pred_fallthru
          _
        %s191 = sshra.s32 %s134, 7
        %s192 = sand.u32 %s134, 127
        %s193 = sadd.s32 %s191, %s143
        %s194 = smul.addr %s193, 4
        %s195 = scalar_lea.vmem %s0, %s194
        %s196 = scalar_lea.vmem [#allocation2], 4
        %s197 = scalar_lea.sflag [#allocation3], 1
        %p199 = scmp.lt.u32.totalorder 4, 8
        %p200 = pneg %p199
        // Predicated region
        $region59: #{tpu_custom_call.1} parent=27 // pred_check
          _
        $region60: #{tpu_custom_call.1} parent=27 // pred_check_branch
          %202 = sbr.rel (%p199) target = $region62
        $region61: #{tpu_custom_call.1} parent=27 // pred_region
          %s217 = sand.u32 4, 7
          %p218 = scmp.eq.s32.totalorder %s217, 0
          %p219 = pneg %p218
          // Predicated region
          $region74: #{tpu_custom_call.1} parent=61 // pred_check
            _
          $region75: #{tpu_custom_call.1} parent=61 // pred_check_branch
            %221 = sbr.rel (%p218) target = $region77
          $region76: #{tpu_custom_call.1} parent=61 // pred_region
            %s222 = sand.u32 4, 7
            %s223 = ssub.s32 4, %s222
            %s224 = scalar_lea.vmem %s195, %s223
            %s225 = ssub.s32 4, %s222
            %s226 = scalar_lea.vmem %s196, %s225 [#allocation2]
            %s227 = sshllo.u32 0, %s222
            loop: start=0, step=1, limit=1
            $region78: #{tpu_custom_call.1} parent=76 // loop_pre_header
              _
            $region79: #{tpu_custom_call.1} parent=76 // loop_header
              %s229 = sphi 0, %s233
              %p230 = scmp.ge.s32.totalorder %s229, 1
              %s234 = sphi %s224, %s224
              %s235 = sphi %s226, %s226
            $region80: #{tpu_custom_call.1} parent=76 // loop_header_branch
              %232 = sbr.rel (%p230) target = $region84
            $region81: #{tpu_custom_call.1} parent=76 // loop_body
              %v236 = vld [vmem:[%s234] sm:%s227]
              %237 = vst [vmem:[%s235] sm:%s227] %v236
            $region82: #{tpu_custom_call.1} parent=76 // loop_footer
              %s233 = sadd.s32 1, %s229
            $region83: #{tpu_custom_call.1} parent=76 // loop_footer_branch
              %228 = sbr.rel target = $region79
            $region84: #{tpu_custom_call.1} parent=76 // loop_exit
              _
          $region77: #{tpu_custom_call.1} parent=61 // pred_fallthru
            _
        $region62: #{tpu_custom_call.1} parent=27 // pred_fallthru
          _
        // Predicated region
        $region63: #{tpu_custom_call.1} parent=27 // pred_check
          %p203 = pneg %p199
        $region64: #{tpu_custom_call.1} parent=27 // pred_check_branch
          %205 = sbr.rel (%p203) target = $region66
        $region65: #{tpu_custom_call.1} parent=27 // pred_region
          %s206 = sshllo.u32 0, 4
          loop: start=0, step=1, limit=1
          $region67: #{tpu_custom_call.1} parent=65 // loop_pre_header
            _
          $region68: #{tpu_custom_call.1} parent=65 // loop_header
            %s208 = sphi 0, %s212
            %p209 = scmp.ge.s32.totalorder %s208, 1
            %s213 = sphi %s195, %s195
            %s214 = sphi %s196, %s196
          $region69: #{tpu_custom_call.1} parent=65 // loop_header_branch
            %211 = sbr.rel (%p209) target = $region73
          $region70: #{tpu_custom_call.1} parent=65 // loop_body
            %v215 = vld [vmem:[%s213] sm:%s206]
            %216 = vst [vmem:[%s214] sm:%s206] %v215
          $region71: #{tpu_custom_call.1} parent=65 // loop_footer
            %s212 = sadd.s32 1, %s208
          $region72: #{tpu_custom_call.1} parent=65 // loop_footer_branch
            %207 = sbr.rel target = $region68
          $region73: #{tpu_custom_call.1} parent=65 // loop_exit
            _
        $region66: #{tpu_custom_call.1} parent=27 // pred_fallthru
          _
        // Predicated region
        $region85: #{tpu_custom_call.1} parent=27 // pred_check
          _
        $region86: #{tpu_custom_call.1} parent=27 // pred_check_branch
          %240 = sbr.rel (0) target = $region88
        $region87: #{tpu_custom_call.1} parent=27 // pred_region
          %241 = vsyncadd %s197, 64
        $region88: #{tpu_custom_call.1} parent=27 // pred_fallthru
          _
        %s242 = sshra.s32 %s140, 7
        %s243 = sand.u32 %s140, 127
        %s244 = sadd.s32 %s242, %s143
        %s245 = smul.addr %s244, 4
        %s246 = scalar_lea.vmem %s0, %s245
        %s247 = scalar_lea.vmem [#allocation2], 8
        %s248 = scalar_lea.sflag [#allocation3], 2
        %p250 = scmp.lt.u32.totalorder 4, 8
        %p251 = pneg %p250
        // Predicated region
        $region89: #{tpu_custom_call.1} parent=27 // pred_check
          _
        $region90: #{tpu_custom_call.1} parent=27 // pred_check_branch
          %253 = sbr.rel (%p250) target = $region92
        $region91: #{tpu_custom_call.1} parent=27 // pred_region
          %s268 = sand.u32 4, 7
          %p269 = scmp.eq.s32.totalorder %s268, 0
          %p270 = pneg %p269
          // Predicated region
          $region104: #{tpu_custom_call.1} parent=91 // pred_check
            _
          $region105: #{tpu_custom_call.1} parent=91 // pred_check_branch
            %272 = sbr.rel (%p269) target = $region107
          $region106: #{tpu_custom_call.1} parent=91 // pred_region
            %s273 = sand.u32 4, 7
            %s274 = ssub.s32 4, %s273
            %s275 = scalar_lea.vmem %s246, %s274
            %s276 = ssub.s32 4, %s273
            %s277 = scalar_lea.vmem %s247, %s276 [#allocation2]
            %s278 = sshllo.u32 0, %s273
            loop: start=0, step=1, limit=1
            $region108: #{tpu_custom_call.1} parent=106 // loop_pre_header
              _
            $region109: #{tpu_custom_call.1} parent=106 // loop_header
              %s280 = sphi 0, %s284
              %p281 = scmp.ge.s32.totalorder %s280, 1
              %s285 = sphi %s275, %s275
              %s286 = sphi %s277, %s277
            $region110: #{tpu_custom_call.1} parent=106 // loop_header_branch
              %283 = sbr.rel (%p281) target = $region114
            $region111: #{tpu_custom_call.1} parent=106 // loop_body
              %v287 = vld [vmem:[%s285] sm:%s278]
              %288 = vst [vmem:[%s286] sm:%s278] %v287
            $region112: #{tpu_custom_call.1} parent=106 // loop_footer
              %s284 = sadd.s32 1, %s280
            $region113: #{tpu_custom_call.1} parent=106 // loop_footer_branch
              %279 = sbr.rel target = $region109
            $region114: #{tpu_custom_call.1} parent=106 // loop_exit
              _
          $region107: #{tpu_custom_call.1} parent=91 // pred_fallthru
            _
        $region92: #{tpu_custom_call.1} parent=27 // pred_fallthru
          _
        // Predicated region
        $region93: #{tpu_custom_call.1} parent=27 // pred_check
          %p254 = pneg %p250
        $region94: #{tpu_custom_call.1} parent=27 // pred_check_branch
          %256 = sbr.rel (%p254) target = $region96
        $region95: #{tpu_custom_call.1} parent=27 // pred_region
          %s257 = sshllo.u32 0, 4
          loop: start=0, step=1, limit=1
          $region97: #{tpu_custom_call.1} parent=95 // loop_pre_header
            _
          $region98: #{tpu_custom_call.1} parent=95 // loop_header
            %s259 = sphi 0, %s263
            %p260 = scmp.ge.s32.totalorder %s259, 1
            %s264 = sphi %s246, %s246
            %s265 = sphi %s247, %s247
          $region99: #{tpu_custom_call.1} parent=95 // loop_header_branch
            %262 = sbr.rel (%p260) target = $region103
          $region100: #{tpu_custom_call.1} parent=95 // loop_body
            %v266 = vld [vmem:[%s264] sm:%s257]
            %267 = vst [vmem:[%s265] sm:%s257] %v266
          $region101: #{tpu_custom_call.1} parent=95 // loop_footer
            %s263 = sadd.s32 1, %s259
          $region102: #{tpu_custom_call.1} parent=95 // loop_footer_branch
            %258 = sbr.rel target = $region98
          $region103: #{tpu_custom_call.1} parent=95 // loop_exit
            _
        $region96: #{tpu_custom_call.1} parent=27 // pred_fallthru
          _
        // Predicated region
        $region115: #{tpu_custom_call.1} parent=27 // pred_check
          _
        $region116: #{tpu_custom_call.1} parent=27 // pred_check_branch
          %291 = sbr.rel (0) target = $region118
        $region117: #{tpu_custom_call.1} parent=27 // pred_region
          %292 = vsyncadd %s248, 64
        $region118: #{tpu_custom_call.1} parent=27 // pred_fallthru
          _
        %s293 = smul.u32 4, 1
        %s294 = smul.u32 %s293, 1
        %s295 = sshll.u32 %s294, 4
        %296 = dma.done [#allocation3], %s295
        %s297 = sshll.u32 %s294, 4
        %298 = dma.done %s197, %s297
        %s299 = sshll.u32 %s294, 4
        %300 = dma.done %s248, %s299
        %p301 = scmp.eq.s32.totalorder %s19, 0
        // Predicated region
        $region119: #{tpu_custom_call.1} parent=27 // pred_check
          %p302 = pneg %p301
        $region120: #{tpu_custom_call.1} parent=27 // pred_check_branch
          %304 = sbr.rel (%p302) target = $region122
        $region121: #{tpu_custom_call.1} parent=27 // pred_region
          %305 = vst [vmem:[#allocation2] sm:$0xf] 0.0
        $region122: #{tpu_custom_call.1} parent=27 // pred_fallthru
          _
        %p306 = scmp.eq.s32.totalorder %s19, 1
        // Predicated region
        $region123: #{tpu_custom_call.1} parent=27 // pred_check
          %p307 = pneg %p306
        $region124: #{tpu_custom_call.1} parent=27 // pred_check_branch
          %309 = sbr.rel (%p307) target = $region126
        $region125: #{tpu_custom_call.1} parent=27 // pred_region
          %310 = vst [vmem:[#allocation2 + $0x8] sm:$0xf] 0.0
        $region126: #{tpu_custom_call.1} parent=27 // pred_fallthru
          _
        %v311 = vlaneseq
        %v312 = vand.u32 %v311, 127
        %vm313 = vcmp.lt.s32.totalorder %v312, 0
        %v314 = vsub.s32 0, %v312
        %v315 = vsel %vm313, %v314, %v312
        %v316 = vshrl.u32 %v315, 4
        %v317 = vand.u32 %v315, 15
        %v318 = vsub.s32 0, %v317
        %v319 = vsel %vm313, %v318, %v317
        %vm320 = vcmp.ne.s32.totalorder %v319, 0
        %vm321 = vcmp.lt.s32.totalorder %v319, 0
        %vm322 = vmand %vm321, %vm320
        %v323 = vadd.s32 %v319, 16
        %v324 = vsel %vm322, %v323, %v319
        %vm325 = vcmp.ge.s32.totalorder %v324, 1
        %vm326 = vcmp.lt.s32.totalorder %v324, 15
        %v327 = vld [vmem:[#allocation2] sm:$0xff]
        %v328 = vld [vmem:[#allocation2 + $0x8] sm:$0xf]
        %v330 = vcombine.high %v327, %v327
        %332 = vrot.lane.b32.xlu0 %v327, 17
        %v333 = vpop.permute.xlu0 %332
        %334 = vrot.lane.b32.xlu0 %v330, 17
        %v335 = vpop.permute.xlu0 %334
        %vm336 = vcmp.lt.s32.totalorder %v312, 17
        %v337 = vsel %vm336, %v333, %v335
        %v338 = vsel %vm325, 1, 0
        %vm339 = vcmp.eq.s32.totalorder %v338, 1
        %v340 = vsel %vm339, %v337, 0.0
        %v341 = vld [vmem:[%s1] sm:$0xf]
        %v342 = vpack.c.bf16 %v340, %v340
        %343 = vrot.lane.b32.xlu0 %v327, 16
        %v344 = vpop.permute.xlu0 %343
        %345 = vrot.lane.b32.xlu0 %v330, 16
        %v346 = vpop.permute.xlu0 %345
        %vm347 = vcmp.lt.s32.totalorder %v312, 16
        %v348 = vsel %vm347, %v344, %v346
        %s349 = scalar_lea.vmem %s1, 4
        %v350 = vld [vmem:[%s349] sm:$0xf]
        %v351 = vpack.c.bf16 %v348, %v348
        %vm352 = vcmask 31744
        %v354 = vsel %vm352, %v350, 0
        %vm356 = vcmask 1041408
        %v358 = vsel %vm356, %v351, 0
        %360 = vmatprep.subr.bf16.mxu0 0
        %361 = vmatpush1.bf16.msra.mxu0 %v358
        %362 = vmatprep.subr.bf16.mxu0 0
        %363 = vmatpush1.bf16.msra.mxu0 0
        %364 = vmatprep.subr.bf16.mxu0 0
        %365 = vmatpush1.bf16.msra.mxu0 0
        %366 = vmatprep.subr.bf16.mxu0 0
        %367 = vmatpush1.bf16.msra.mxu0 0
        %368 = vmatprep.subr.bf16.mxu0 0
        %369 = vmatpush1.bf16.msra.mxu0 0
        %370 = vmatprep.subr.bf16.mxu0 0
        %371 = vmatpush1.bf16.msra.mxu0 0
        %372 = vmatprep.subr.bf16.mxu0 0
        %373 = vmatpush1.bf16.msra.mxu0 0
        %374 = vmatprep.subr.bf16.mxu0 0
        %375 = vmatpush1.bf16.msra.mxu0 0
        %376 = vmatprep.subr.bf16.mxu0 0
        %377 = vmatpush1.bf16.msra.mxu0 0
        %378 = vmatprep.subr.bf16.mxu0 0
        %379 = vmatpush1.bf16.msra.mxu0 0
        %380 = vmatprep.subr.bf16.mxu0 0
        %381 = vmatpush1.bf16.msra.mxu0 0
        %382 = vmatprep.subr.bf16.mxu0 0
        %383 = vmatpush1.bf16.msra.mxu0 0
        %384 = vmatprep.subr.bf16.mxu0 0
        %385 = vmatpush1.bf16.msra.mxu0 0
        %386 = vmatprep.subr.bf16.mxu0 0
        %387 = vmatpush1.bf16.msra.mxu0 0
        %388 = vmatprep.subr.bf16.mxu0 0
        %389 = vmatpush1.bf16.msra.mxu0 0
        %390 = vmatprep.subr.bf16.mxu0 0
        %391 = vmatpush1.bf16.msra.mxu0 0
        %392 = vmatprep.mubr.bf16.mxu0 0
        %393 = vmatmul.mubr.bf16.gmra.mrb[0].mxu0 %v354
        %v394 = vpop.f32.mrb[0].mxu0
        %v395 = vadd.f32 0.0, %v394
        %v396 = vpop.f32.mrb[0].mxu0
        %v397 = vpop.f32.mrb[0].mxu0
        %v398 = vpop.f32.mrb[0].mxu0
        %399 = vdwg.mxu0
        %v401 = vsel %vm352, %v341, 0
        %v404 = vsel %vm356, %v342, 0
        %406 = vmatprep.subr.bf16.mxu0 0
        %407 = vmatpush1.bf16.msra.mxu0 %v404
        %408 = vmatprep.subr.bf16.mxu0 0
        %409 = vmatpush1.bf16.msra.mxu0 0
        %410 = vmatprep.subr.bf16.mxu0 0
        %411 = vmatpush1.bf16.msra.mxu0 0
        %412 = vmatprep.subr.bf16.mxu0 0
        %413 = vmatpush1.bf16.msra.mxu0 0
        %414 = vmatprep.subr.bf16.mxu0 0
        %415 = vmatpush1.bf16.msra.mxu0 0
        %416 = vmatprep.subr.bf16.mxu0 0
        %417 = vmatpush1.bf16.msra.mxu0 0
        %418 = vmatprep.subr.bf16.mxu0 0
        %419 = vmatpush1.bf16.msra.mxu0 0
        %420 = vmatprep.subr.bf16.mxu0 0
        %421 = vmatpush1.bf16.msra.mxu0 0
        %422 = vmatprep.subr.bf16.mxu0 0
        %423 = vmatpush1.bf16.msra.mxu0 0
        %424 = vmatprep.subr.bf16.mxu0 0
        %425 = vmatpush1.bf16.msra.mxu0 0
        %426 = vmatprep.subr.bf16.mxu0 0
        %427 = vmatpush1.bf16.msra.mxu0 0
        %428 = vmatprep.subr.bf16.mxu0 0
        %429 = vmatpush1.bf16.msra.mxu0 0
        %430 = vmatprep.subr.bf16.mxu0 0
        %431 = vmatpush1.bf16.msra.mxu0 0
        %432 = vmatprep.subr.bf16.mxu0 0
        %433 = vmatpush1.bf16.msra.mxu0 0
        %434 = vmatprep.subr.bf16.mxu0 0
        %435 = vmatpush1.bf16.msra.mxu0 0
        %436 = vmatprep.subr.bf16.mxu0 0
        %437 = vmatpush1.bf16.msra.mxu0 0
        %438 = vmatprep.mubr.bf16.mxu0 0
        %439 = vmatmul.mubr.bf16.gmra.mrb[0].mxu0 %v401
        %v440 = vpop.f32.mrb[0].mxu0
        %v441 = vadd.f32 %v395, %v440
        %v442 = vpop.f32.mrb[0].mxu0
        %v443 = vpop.f32.mrb[0].mxu0
        %v444 = vpop.f32.mrb[0].mxu0
        %445 = vdwg.mxu0
        %446 = vrot.lane.b32.xlu0 %v327, 15
        %v447 = vpop.permute.xlu0 %446
        %448 = vrot.lane.b32.xlu0 %v330, 15
        %v449 = vpop.permute.xlu0 %448
        %vm450 = vcmp.lt.s32.totalorder %v312, 15
        %v451 = vsel %vm450, %v447, %v449
        %v452 = vsel %vm326, 1, 0
        %vm453 = vcmp.eq.s32.totalorder %v452, 1
        %v454 = vsel %vm453, %v451, 0.0
        %s455 = scalar_lea.vmem %s1, 8
        %v456 = vld [vmem:[%s455] sm:$0xf]
        %v457 = vpack.c.bf16 %v454, %v454
        %v459 = vsel %vm352, %v456, 0
        %v462 = vsel %vm356, %v457, 0
        %464 = vmatprep.subr.bf16.mxu0 0
        %465 = vmatpush1.bf16.msra.mxu0 %v462
        %466 = vmatprep.subr.bf16.mxu0 0
        %467 = vmatpush1.bf16.msra.mxu0 0
        %468 = vmatprep.subr.bf16.mxu0 0
        %469 = vmatpush1.bf16.msra.mxu0 0
        %470 = vmatprep.subr.bf16.mxu0 0
        %471 = vmatpush1.bf16.msra.mxu0 0
        %472 = vmatprep.subr.bf16.mxu0 0
        %473 = vmatpush1.bf16.msra.mxu0 0
        %474 = vmatprep.subr.bf16.mxu0 0
        %475 = vmatpush1.bf16.msra.mxu0 0
        %476 = vmatprep.subr.bf16.mxu0 0
        %477 = vmatpush1.bf16.msra.mxu0 0
        %478 = vmatprep.subr.bf16.mxu0 0
        %479 = vmatpush1.bf16.msra.mxu0 0
        %480 = vmatprep.subr.bf16.mxu0 0
        %481 = vmatpush1.bf16.msra.mxu0 0
        %482 = vmatprep.subr.bf16.mxu0 0
        %483 = vmatpush1.bf16.msra.mxu0 0
        %484 = vmatprep.subr.bf16.mxu0 0
        %485 = vmatpush1.bf16.msra.mxu0 0
        %486 = vmatprep.subr.bf16.mxu0 0
        %487 = vmatpush1.bf16.msra.mxu0 0
        %488 = vmatprep.subr.bf16.mxu0 0
        %489 = vmatpush1.bf16.msra.mxu0 0
        %490 = vmatprep.subr.bf16.mxu0 0
        %491 = vmatpush1.bf16.msra.mxu0 0
        %492 = vmatprep.subr.bf16.mxu0 0
        %493 = vmatpush1.bf16.msra.mxu0 0
        %494 = vmatprep.subr.bf16.mxu0 0
        %495 = vmatpush1.bf16.msra.mxu0 0
        %496 = vmatprep.mubr.bf16.mxu0 0
        %497 = vmatmul.mubr.bf16.gmra.mrb[0].mxu0 %v459
        %v498 = vpop.f32.mrb[0].mxu0
        %v499 = vadd.f32 0.0, %v498
        %v500 = vpop.f32.mrb[0].mxu0
        %v501 = vpop.f32.mrb[0].mxu0
        %v502 = vpop.f32.mrb[0].mxu0
        %503 = vdwg.mxu0
        %v504 = vadd.f32 %v441, %v499
        %505 = vrot.lane.b32.xlu0 %v327, 1
        %v506 = vpop.permute.xlu0 %505
        %507 = vrot.lane.b32.xlu0 %v330, 1
        %v508 = vpop.permute.xlu0 %507
        %vm509 = vcmp.lt.s32.totalorder %v312, 1
        %v510 = vsel %vm509, %v506, %v508
        %v511 = vsel %vm339, %v510, 0.0
        %s512 = scalar_lea.vmem %s1, 12
        %v513 = vld [vmem:[%s512] sm:$0xf]
        %v514 = vpack.c.bf16 %v511, %v511
        %v516 = vsel %vm352, %v513, 0
        %v519 = vsel %vm356, %v514, 0
        %521 = vmatprep.subr.bf16.mxu0 0
        %522 = vmatpush1.bf16.msra.mxu0 %v519
        %523 = vmatprep.subr.bf16.mxu0 0
        %524 = vmatpush1.bf16.msra.mxu0 0
        %525 = vmatprep.subr.bf16.mxu0 0
        %526 = vmatpush1.bf16.msra.mxu0 0
        %527 = vmatprep.subr.bf16.mxu0 0
        %528 = vmatpush1.bf16.msra.mxu0 0
        %529 = vmatprep.subr.bf16.mxu0 0
        %530 = vmatpush1.bf16.msra.mxu0 0
        %531 = vmatprep.subr.bf16.mxu0 0
        %532 = vmatpush1.bf16.msra.mxu0 0
        %533 = vmatprep.subr.bf16.mxu0 0
        %534 = vmatpush1.bf16.msra.mxu0 0
        %535 = vmatprep.subr.bf16.mxu0 0
        %536 = vmatpush1.bf16.msra.mxu0 0
        %537 = vmatprep.subr.bf16.mxu0 0
        %538 = vmatpush1.bf16.msra.mxu0 0
        %539 = vmatprep.subr.bf16.mxu0 0
        %540 = vmatpush1.bf16.msra.mxu0 0
        %541 = vmatprep.subr.bf16.mxu0 0
        %542 = vmatpush1.bf16.msra.mxu0 0
        %543 = vmatprep.subr.bf16.mxu0 0
        %544 = vmatpush1.bf16.msra.mxu0 0
        %545 = vmatprep.subr.bf16.mxu0 0
        %546 = vmatpush1.bf16.msra.mxu0 0
        %547 = vmatprep.subr.bf16.mxu0 0
        %548 = vmatpush1.bf16.msra.mxu0 0
        %549 = vmatprep.subr.bf16.mxu0 0
        %550 = vmatpush1.bf16.msra.mxu0 0
        %551 = vmatprep.subr.bf16.mxu0 0
        %552 = vmatpush1.bf16.msra.mxu0 0
        %553 = vmatprep.mubr.bf16.mxu0 0
        %554 = vmatmul.mubr.bf16.gmra.mrb[0].mxu0 %v516
        %v555 = vpop.f32.mrb[0].mxu0
        %v556 = vadd.f32 0.0, %v555
        %v557 = vpop.f32.mrb[0].mxu0
        %v558 = vpop.f32.mrb[0].mxu0
        %v559 = vpop.f32.mrb[0].mxu0
        %560 = vdwg.mxu0
        %v561 = vadd.f32 %v504, %v556
        %s562 = scalar_lea.vmem %s1, 16
        %v563 = vld [vmem:[%s562] sm:$0xf]
        %v564 = vpack.c.bf16 %v330, %v330
        %v566 = vsel %vm352, %v563, 0
        %v569 = vsel %vm356, %v564, 0
        %571 = vmatprep.subr.bf16.mxu0 0
        %572 = vmatpush1.bf16.msra.mxu0 %v569
        %573 = vmatprep.subr.bf16.mxu0 0
        %574 = vmatpush1.bf16.msra.mxu0 0
        %575 = vmatprep.subr.bf16.mxu0 0
        %576 = vmatpush1.bf16.msra.mxu0 0
        %577 = vmatprep.subr.bf16.mxu0 0
        %578 = vmatpush1.bf16.msra.mxu0 0
        %579 = vmatprep.subr.bf16.mxu0 0
        %580 = vmatpush1.bf16.msra.mxu0 0
        %581 = vmatprep.subr.bf16.mxu0 0
        %582 = vmatpush1.bf16.msra.mxu0 0
        %583 = vmatprep.subr.bf16.mxu0 0
        %584 = vmatpush1.bf16.msra.mxu0 0
        %585 = vmatprep.subr.bf16.mxu0 0
        %586 = vmatpush1.bf16.msra.mxu0 0
        %587 = vmatprep.subr.bf16.mxu0 0
        %588 = vmatpush1.bf16.msra.mxu0 0
        %589 = vmatprep.subr.bf16.mxu0 0
        %590 = vmatpush1.bf16.msra.mxu0 0
        %591 = vmatprep.subr.bf16.mxu0 0
        %592 = vmatpush1.bf16.msra.mxu0 0
        %593 = vmatprep.subr.bf16.mxu0 0
        %594 = vmatpush1.bf16.msra.mxu0 0
        %595 = vmatprep.subr.bf16.mxu0 0
        %596 = vmatpush1.bf16.msra.mxu0 0
        %597 = vmatprep.subr.bf16.mxu0 0
        %598 = vmatpush1.bf16.msra.mxu0 0
        %599 = vmatprep.subr.bf16.mxu0 0
        %600 = vmatpush1.bf16.msra.mxu0 0
        %601 = vmatprep.subr.bf16.mxu0 0
        %602 = vmatpush1.bf16.msra.mxu0 0
        %603 = vmatprep.mubr.bf16.mxu0 0
        %604 = vmatmul.mubr.bf16.gmra.mrb[0].mxu0 %v566
        %v605 = vpop.f32.mrb[0].mxu0
        %v606 = vadd.f32 0.0, %v605
        %v607 = vpop.f32.mrb[0].mxu0
        %v608 = vpop.f32.mrb[0].mxu0
        %v609 = vpop.f32.mrb[0].mxu0
        %610 = vdwg.mxu0
        %v611 = vadd.f32 %v561, %v606
        %612 = vrot.lane.b32.xlu0 %v330, 127
        %v613 = vpop.permute.xlu0 %612
        %614 = vrot.lane.b32.xlu0 %v328, 127
        %v615 = vpop.permute.xlu0 %614
        %vm616 = vcmp.lt.s32.totalorder %v312, 127
        %v617 = vsel %vm616, %v613, %v615
        %v618 = vsel %vm453, %v617, 0.0
        %s619 = scalar_lea.vmem %s1, 20
        %v620 = vld [vmem:[%s619] sm:$0xf]
        %v621 = vpack.c.bf16 %v618, %v618
        %v623 = vsel %vm352, %v620, 0
        %v626 = vsel %vm356, %v621, 0
        %628 = vmatprep.subr.bf16.mxu0 0
        %629 = vmatpush1.bf16.msra.mxu0 %v626
        %630 = vmatprep.subr.bf16.mxu0 0
        %631 = vmatpush1.bf16.msra.mxu0 0
        %632 = vmatprep.subr.bf16.mxu0 0
        %633 = vmatpush1.bf16.msra.mxu0 0
        %634 = vmatprep.subr.bf16.mxu0 0
        %635 = vmatpush1.bf16.msra.mxu0 0
        %636 = vmatprep.subr.bf16.mxu0 0
        %637 = vmatpush1.bf16.msra.mxu0 0
        %638 = vmatprep.subr.bf16.mxu0 0
        %639 = vmatpush1.bf16.msra.mxu0 0
        %640 = vmatprep.subr.bf16.mxu0 0
        %641 = vmatpush1.bf16.msra.mxu0 0
        %642 = vmatprep.subr.bf16.mxu0 0
        %643 = vmatpush1.bf16.msra.mxu0 0
        %644 = vmatprep.subr.bf16.mxu0 0
        %645 = vmatpush1.bf16.msra.mxu0 0
        %646 = vmatprep.subr.bf16.mxu0 0
        %647 = vmatpush1.bf16.msra.mxu0 0
        %648 = vmatprep.subr.bf16.mxu0 0
        %649 = vmatpush1.bf16.msra.mxu0 0
        %650 = vmatprep.subr.bf16.mxu0 0
        %651 = vmatpush1.bf16.msra.mxu0 0
        %652 = vmatprep.subr.bf16.mxu0 0
        %653 = vmatpush1.bf16.msra.mxu0 0
        %654 = vmatprep.subr.bf16.mxu0 0
        %655 = vmatpush1.bf16.msra.mxu0 0
        %656 = vmatprep.subr.bf16.mxu0 0
        %657 = vmatpush1.bf16.msra.mxu0 0
        %658 = vmatprep.subr.bf16.mxu0 0
        %659 = vmatpush1.bf16.msra.mxu0 0
        %660 = vmatprep.mubr.bf16.mxu0 0
        %661 = vmatmul.mubr.bf16.gmra.mrb[0].mxu0 %v623
        %v662 = vpop.f32.mrb[0].mxu0
        %v663 = vadd.f32 0.0, %v662
        %v664 = vpop.f32.mrb[0].mxu0
        %v665 = vpop.f32.mrb[0].mxu0
        %v666 = vpop.f32.mrb[0].mxu0
        %667 = vdwg.mxu0
        %v668 = vadd.f32 %v611, %v663
        %669 = vrot.lane.b32.xlu0 %v330, 113
        %v670 = vpop.permute.xlu0 %669
        %671 = vrot.lane.b32.xlu0 %v328, 113
        %v672 = vpop.permute.xlu0 %671
        %vm673 = vcmp.lt.s32.totalorder %v312, 113
        %v674 = vsel %vm673, %v670, %v672
        %v675 = vsel %vm339, %v674, 0.0
        %s676 = scalar_lea.vmem %s1, 24
        %v677 = vld [vmem:[%s676] sm:$0xf]
        %v678 = vpack.c.bf16 %v675, %v675
        %v680 = vsel %vm352, %v677, 0
        %v683 = vsel %vm356, %v678, 0
        %685 = vmatprep.subr.bf16.mxu0 0
        %686 = vmatpush1.bf16.msra.mxu0 %v683
        %687 = vmatprep.subr.bf16.mxu0 0
        %688 = vmatpush1.bf16.msra.mxu0 0
        %689 = vmatprep.subr.bf16.mxu0 0
        %690 = vmatpush1.bf16.msra.mxu0 0
        %691 = vmatprep.subr.bf16.mxu0 0
        %692 = vmatpush1.bf16.msra.mxu0 0
        %693 = vmatprep.subr.bf16.mxu0 0
        %694 = vmatpush1.bf16.msra.mxu0 0
        %695 = vmatprep.subr.bf16.mxu0 0
        %696 = vmatpush1.bf16.msra.mxu0 0
        %697 = vmatprep.subr.bf16.mxu0 0
        %698 = vmatpush1.bf16.msra.mxu0 0
        %699 = vmatprep.subr.bf16.mxu0 0
        %700 = vmatpush1.bf16.msra.mxu0 0
        %701 = vmatprep.subr.bf16.mxu0 0
        %702 = vmatpush1.bf16.msra.mxu0 0
        %703 = vmatprep.subr.bf16.mxu0 0
        %704 = vmatpush1.bf16.msra.mxu0 0
        %705 = vmatprep.subr.bf16.mxu0 0
        %706 = vmatpush1.bf16.msra.mxu0 0
        %707 = vmatprep.subr.bf16.mxu0 0
        %708 = vmatpush1.bf16.msra.mxu0 0
        %709 = vmatprep.subr.bf16.mxu0 0
        %710 = vmatpush1.bf16.msra.mxu0 0
        %711 = vmatprep.subr.bf16.mxu0 0
        %712 = vmatpush1.bf16.msra.mxu0 0
        %713 = vmatprep.subr.bf16.mxu0 0
        %714 = vmatpush1.bf16.msra.mxu0 0
        %715 = vmatprep.subr.bf16.mxu0 0
        %716 = vmatpush1.bf16.msra.mxu0 0
        %717 = vmatprep.mubr.bf16.mxu0 0
        %718 = vmatmul.mubr.bf16.gmra.mrb[0].mxu0 %v680
        %v719 = vpop.f32.mrb[0].mxu0
        %v720 = vadd.f32 0.0, %v719
        %v721 = vpop.f32.mrb[0].mxu0
        %v722 = vpop.f32.mrb[0].mxu0
        %v723 = vpop.f32.mrb[0].mxu0
        %724 = vdwg.mxu0
        %v725 = vadd.f32 %v668, %v720
        %726 = vrot.lane.b32.xlu0 %v330, 112
        %v727 = vpop.permute.xlu0 %726
        %728 = vrot.lane.b32.xlu0 %v328, 112
        %v729 = vpop.permute.xlu0 %728
        %vm730 = vcmp.lt.s32.totalorder %v312, 112
        %v731 = vsel %vm730, %v727, %v729
        %s732 = scalar_lea.vmem %s1, 28
        %v733 = vld [vmem:[%s732] sm:$0xf]
        %v734 = vpack.c.bf16 %v731, %v731
        %v736 = vsel %vm352, %v733, 0
        %v739 = vsel %vm356, %v734, 0
        %741 = vmatprep.subr.bf16.mxu0 0
        %742 = vmatpush1.bf16.msra.mxu0 %v739
        %743 = vmatprep.subr.bf16.mxu0 0
        %744 = vmatpush1.bf16.msra.mxu0 0
        %745 = vmatprep.subr.bf16.mxu0 0
        %746 = vmatpush1.bf16.msra.mxu0 0
        %747 = vmatprep.subr.bf16.mxu0 0
        %748 = vmatpush1.bf16.msra.mxu0 0
        %749 = vmatprep.subr.bf16.mxu0 0
        %750 = vmatpush1.bf16.msra.mxu0 0
        %751 = vmatprep.subr.bf16.mxu0 0
        %752 = vmatpush1.bf16.msra.mxu0 0
        %753 = vmatprep.subr.bf16.mxu0 0
        %754 = vmatpush1.bf16.msra.mxu0 0
        %755 = vmatprep.subr.bf16.mxu0 0
        %756 = vmatpush1.bf16.msra.mxu0 0
        %757 = vmatprep.subr.bf16.mxu0 0
        %758 = vmatpush1.bf16.msra.mxu0 0
        %759 = vmatprep.subr.bf16.mxu0 0
        %760 = vmatpush1.bf16.msra.mxu0 0
        %761 = vmatprep.subr.bf16.mxu0 0
        %762 = vmatpush1.bf16.msra.mxu0 0
        %763 = vmatprep.subr.bf16.mxu0 0
        %764 = vmatpush1.bf16.msra.mxu0 0
        %765 = vmatprep.subr.bf16.mxu0 0
        %766 = vmatpush1.bf16.msra.mxu0 0
        %767 = vmatprep.subr.bf16.mxu0 0
        %768 = vmatpush1.bf16.msra.mxu0 0
        %769 = vmatprep.subr.bf16.mxu0 0
        %770 = vmatpush1.bf16.msra.mxu0 0
        %771 = vmatprep.subr.bf16.mxu0 0
        %772 = vmatpush1.bf16.msra.mxu0 0
        %773 = vmatprep.mubr.bf16.mxu0 0
        %774 = vmatmul.mubr.bf16.gmra.mrb[0].mxu0 %v736
        %v775 = vpop.f32.mrb[0].mxu0
        %v776 = vadd.f32 0.0, %v775
        %v777 = vpop.f32.mrb[0].mxu0
        %v778 = vpop.f32.mrb[0].mxu0
        %v779 = vpop.f32.mrb[0].mxu0
        %780 = vdwg.mxu0
        %v781 = vadd.f32 %v725, %v776
        %782 = vrot.lane.b32.xlu0 %v330, 111
        %v783 = vpop.permute.xlu0 %782
        %784 = vrot.lane.b32.xlu0 %v328, 111
        %v785 = vpop.permute.xlu0 %784
        %vm786 = vcmp.lt.s32.totalorder %v312, 111
        %v787 = vsel %vm786, %v783, %v785
        %v788 = vsel %vm453, %v787, 0.0
        %s789 = scalar_lea.vmem %s1, 32
        %v790 = vld [vmem:[%s789] sm:$0xf]
        %v791 = vpack.c.bf16 %v788, %v788
        %v793 = vsel %vm352, %v790, 0
        %v796 = vsel %vm356, %v791, 0
        %798 = vmatprep.subr.bf16.mxu0 0
        %799 = vmatpush1.bf16.msra.mxu0 %v796
        %800 = vmatprep.subr.bf16.mxu0 0
        %801 = vmatpush1.bf16.msra.mxu0 0
        %802 = vmatprep.subr.bf16.mxu0 0
        %803 = vmatpush1.bf16.msra.mxu0 0
        %804 = vmatprep.subr.bf16.mxu0 0
        %805 = vmatpush1.bf16.msra.mxu0 0
        %806 = vmatprep.subr.bf16.mxu0 0
        %807 = vmatpush1.bf16.msra.mxu0 0
        %808 = vmatprep.subr.bf16.mxu0 0
        %809 = vmatpush1.bf16.msra.mxu0 0
        %810 = vmatprep.subr.bf16.mxu0 0
        %811 = vmatpush1.bf16.msra.mxu0 0
        %812 = vmatprep.subr.bf16.mxu0 0
        %813 = vmatpush1.bf16.msra.mxu0 0
        %814 = vmatprep.subr.bf16.mxu0 0
        %815 = vmatpush1.bf16.msra.mxu0 0
        %816 = vmatprep.subr.bf16.mxu0 0
        %817 = vmatpush1.bf16.msra.mxu0 0
        %818 = vmatprep.subr.bf16.mxu0 0
        %819 = vmatpush1.bf16.msra.mxu0 0
        %820 = vmatprep.subr.bf16.mxu0 0
        %821 = vmatpush1.bf16.msra.mxu0 0
        %822 = vmatprep.subr.bf16.mxu0 0
        %823 = vmatpush1.bf16.msra.mxu0 0
        %824 = vmatprep.subr.bf16.mxu0 0
        %825 = vmatpush1.bf16.msra.mxu0 0
        %826 = vmatprep.subr.bf16.mxu0 0
        %827 = vmatpush1.bf16.msra.mxu0 0
        %828 = vmatprep.subr.bf16.mxu0 0
        %829 = vmatpush1.bf16.msra.mxu0 0
        %830 = vmatprep.mubr.bf16.mxu0 0
        %831 = vmatmul.mubr.bf16.gmra.mrb[0].mxu0 %v793
        %v832 = vpop.f32.mrb[0].mxu0
        %v833 = vadd.f32 0.0, %v832
        %v834 = vpop.f32.mrb[0].mxu0
        %v835 = vpop.f32.mrb[0].mxu0
        %v836 = vpop.f32.mrb[0].mxu0
        %837 = vdwg.mxu0
        %v838 = vadd.f32 %v781, %v833
        %v839 = vld [vmem:[%s2] sm:$0xff]
        %841 = vset.pattern.permute.xlu0 0
        %842 = vperm.xlu0 %841, %v839
        %v843 = vpop.permute.xlu0 %842
        %v845 = vadd.f32 %v838, %v843
        %v846 = vmax.f32 %v845, 0.0
        %847 = vst [vmem:[%s132] sm:$0xf] %v330
        %848 = vst [vmem:[%s132 + $0x4] sm:$0xff] %v846
        %s849 = sand.u32 %s78, 1
        %s850 = sand.u32 %s78, 1
        %s851 = smul.addr %s850, 16
        %s852 = scalar_lea.vmem [#allocation4], %s851
        // Predicated region
        $region127: #{tpu_custom_call.1} parent=27 // pred_check
          %p853 = pneg %p88
        $region128: #{tpu_custom_call.1} parent=27 // pred_check_branch
          %855 = sbr.rel (%p853) target = $region130
        $region129: #{tpu_custom_call.1} parent=27 // pred_region
          %s856 = smul.addr %s18, 4
          %s857 = sadd.s32 %s19, %s856
          %s858 = smul.addr %s857, 8
          %s859 = scalar_lea.vmem %s3, %s858
          // Predicated region
          $region131: #{tpu_custom_call.1} parent=129 // pred_check
            _
          $region132: #{tpu_custom_call.1} parent=129 // pred_check_branch
            %861 = sbr.rel (0) target = $region134
          $region133: #{tpu_custom_call.1} parent=129 // pred_region
            // Predicated region
            $region135: #{tpu_custom_call.1} parent=133 // pred_check
              _
            $region136: #{tpu_custom_call.1} parent=133 // pred_check_branch
              %863 = sbr.rel (0) target = $region138
            $region137: #{tpu_custom_call.1} parent=133 // pred_region
              // Predicated region
              $region150: #{tpu_custom_call.1} parent=137 // pred_check
                _
              $region151: #{tpu_custom_call.1} parent=137 // pred_check_branch
                %880 = sbr.rel (0) target = $region153
              $region152: #{tpu_custom_call.1} parent=137 // pred_region
                loop: start=0, step=1, limit=1
                $region154: #{tpu_custom_call.1} parent=152 // loop_pre_header
                  _
                $region155: #{tpu_custom_call.1} parent=152 // loop_header
                  %s882 = sphi 0, %s886
                  %p883 = scmp.ge.s32.totalorder %s882, 1
                  %s887 = sphi %s852, %s852
                  %s888 = sphi %s859, %s859
                $region156: #{tpu_custom_call.1} parent=152 // loop_header_branch
                  %885 = sbr.rel (%p883) target = $region160
                $region157: #{tpu_custom_call.1} parent=152 // loop_body
                  %v889 = vld [vmem:[%s887] sm:$0xff]
                  %890 = vst [vmem:[%s888] sm:$0xff] %v889
                  %v891 = vld [vmem:[%s887 + $0x8] sm:$0xff]
                  %892 = vst [vmem:[%s888 + $0x10] sm:$0xff] %v891
                $region158: #{tpu_custom_call.1} parent=152 // loop_footer
                  %s886 = sadd.s32 1, %s882
                $region159: #{tpu_custom_call.1} parent=152 // loop_footer_branch
                  %881 = sbr.rel target = $region155
                $region160: #{tpu_custom_call.1} parent=152 // loop_exit
                  _
              $region153: #{tpu_custom_call.1} parent=137 // pred_fallthru
                _
              // Predicated region
              $region161: #{tpu_custom_call.1} parent=137 // pred_check
                _
              $region162: #{tpu_custom_call.1} parent=137 // pred_check_branch
                %894 = sbr.rel target = $region164
              $region163: #{tpu_custom_call.1} parent=137 // pred_region
                _
              $region164: #{tpu_custom_call.1} parent=137 // pred_fallthru
                _
            $region138: #{tpu_custom_call.1} parent=133 // pred_fallthru
              _
            // Predicated region
            $region139: #{tpu_custom_call.1} parent=133 // pred_check
              _
            $region140: #{tpu_custom_call.1} parent=133 // pred_check_branch
              %865 = sbr.rel target = $region142
            $region141: #{tpu_custom_call.1} parent=133 // pred_region
              loop: start=0, step=1, limit=1
              $region143: #{tpu_custom_call.1} parent=141 // loop_pre_header
                _
              $region144: #{tpu_custom_call.1} parent=141 // loop_header
                %s868 = sphi 0, %s872
                %p869 = scmp.ge.s32.totalorder %s868, 1
                %s873 = sphi %s852, %s852
                %s874 = sphi %s859, %s859
              $region145: #{tpu_custom_call.1} parent=141 // loop_header_branch
                %871 = sbr.rel (%p869) target = $region149
              $region146: #{tpu_custom_call.1} parent=141 // loop_body
                %v875 = vld [vmem:[%s873] sm:$0xff]
                %876 = vst [vmem:[%s874] sm:$0xff] %v875
                %v877 = vld [vmem:[%s873 + $0x8] sm:$0xff]
                %878 = vst [vmem:[%s874 + $0x10] sm:$0xff] %v877
              $region147: #{tpu_custom_call.1} parent=141 // loop_footer
                %s872 = sadd.s32 1, %s868
              $region148: #{tpu_custom_call.1} parent=141 // loop_footer_branch
                %867 = sbr.rel target = $region144
              $region149: #{tpu_custom_call.1} parent=141 // loop_exit
                _
            $region142: #{tpu_custom_call.1} parent=133 // pred_fallthru
              _
          $region134: #{tpu_custom_call.1} parent=129 // pred_fallthru
            _
          %895 = vnop
        $region130: #{tpu_custom_call.1} parent=27 // pred_fallthru
          _
      $region28: #{tpu_custom_call.1} parent=5 // pred_fallthru
        _
      %p896 = scmp.le.s32.totalorder 2, %s9
      // Predicated region
      $region165: #{tpu_custom_call.1} parent=5 // pred_check
        %p897 = pneg %p896
      $region166: #{tpu_custom_call.1} parent=5 // pred_check_branch
        %899 = sbr.rel (%p897) target = $region168
      $region167: #{tpu_custom_call.1} parent=5 // pred_region
        %s900 = ssub.s32 %s9, 2
        // Predicated region
        $region169: #{tpu_custom_call.1} parent=167 // pred_check
          %p901 = pneg %p94
        $region170: #{tpu_custom_call.1} parent=167 // pred_check_branch
          %903 = sbr.rel (%p901) target = $region172
        $region171: #{tpu_custom_call.1} parent=167 // pred_region
          %s904 = sand.u32 %s79, 1
          %s905 = sand.u32 %s79, 1
          %s906 = smul.addr %s905, 16
          %s907 = scalar_lea.vmem [#allocation4], %s906
        $region172: #{tpu_custom_call.1} parent=167 // pred_fallthru
          _
      $region168: #{tpu_custom_call.1} parent=5 // pred_fallthru
        _
    $region6: #{tpu_custom_call.1} parent=1 // loop_footer
      %s13 = sadd.s32 1, %s9
    $region7: #{tpu_custom_call.1} parent=1 // loop_footer_branch
      %8 = sbr.rel target = $region3
    $region8: #{tpu_custom_call.1} parent=1 // loop_exit
      _
  %908 = vsyncmov [#allocation3]
  %s909 = vpop.sfrf %908
  %p910 = scmp.eq.s32.totalorder %s909, 0
  %p911 = pneg %p910
  %913 = shalt.err (%p911)
  %s914 = scalar_lea.sflag [#allocation3], 1
  %915 = vsyncmov %s914
  %s916 = vpop.sfrf %915
  %p917 = scmp.eq.s32.totalorder %s916, 0
  %p918 = pneg %p917
  %920 = shalt.err (%p918)
  %s921 = scalar_lea.sflag [#allocation3], 2
  %922 = vsyncmov %s921
  %s923 = vpop.sfrf %922
  %p924 = scmp.eq.s32.totalorder %s923, 0
  %p925 = pneg %p924
  %927 = shalt.err (%p925)

</llo_original>
